<compile_context>
chip_gen: v7x
topology: tpu7x:2x2x1
jax: 0.10.0
libtpu: 0.0.40
codegen_flags: <defaults>
</compile_context>

<pallas_src>
import functools

import jax
import jax.numpy as jnp
from jax.experimental import pallas as pl
from jax.experimental.pallas import tpu as pltpu

_BN_EPS = 1e-5


def _round_up(x, m):
    return ((x + m - 1) // m) * m


def _fused_gin_kernel(x0_ref, a_ref, w1_ref, b1_ref, w2_ref, b2_ref,
                      gamma_ref, beta_ref, o_ref,
                      acc_ref, h_ref, h2_ref, ssum_ref, ssq_ref,
                      *, num_nodes, num_layers, tm, tk):
    """Fused multi-layer GIN forward. Grid = (layer, row_tile, col_tile)."""
    l = pl.program_id(0)
    i = pl.program_id(1)
    k = pl.program_id(2)
    n_i = pl.num_programs(1)
    n_k = pl.num_programs(2)

    row0 = pl.multiple_of(i * tm, tm)
    col0 = pl.multiple_of(k * tk, tk)

    # Stage the (padded) input node features into the resident activation
    # buffer once, at the very first grid step.
    @pl.when((l == 0) & (i == 0) & (k == 0))
    def _stage_input():
        h_ref[...] = x0_ref[...]

    # Per-layer init of the BatchNorm statistic accumulators.
    @pl.when((i == 0) & (k == 0))
    def _zero_stats():
        ssum_ref[...] = jnp.zeros_like(ssum_ref)
        ssq_ref[...] = jnp.zeros_like(ssq_ref)

    # GIN self term: z = (1 + eps) * h with eps = 0.
    @pl.when(k == 0)
    def _init_acc():
        acc_ref[...] = h_ref[pl.ds(row0, tm), :]

    # Aggregation: z += A[row_tile, col_tile] @ h[col_tile].
    # A is bf16 (exact small-integer edge counts); accumulate in f32.
    a_blk = a_ref[...].astype(jnp.float32)
    acc_ref[...] += jnp.dot(a_blk, h_ref[pl.ds(col0, tk), :],
                            preferred_element_type=jnp.float32)

    # After the last column tile: GIN MLP on this row tile + masked BN stats.
    @pl.when(k == n_k - 1)
    def _mlp_and_stats():
        z = acc_ref[...]
        h1 = jnp.dot(z, w1_ref[0], preferred_element_type=jnp.float32) + b1_ref[0]
        h1 = jnp.maximum(h1, 0.0)
        h2 = jnp.dot(h1, w2_ref[0], preferred_element_type=jnp.float32) + b2_ref[0]
        h2_ref[pl.ds(row0, tm), :] = h2

        # Exclude zero-padded rows from the batch statistics.
        rows = jax.lax.broadcasted_iota(jnp.int32, (tm, 1), 0) + row0
        mask = (rows < num_nodes).astype(jnp.float32)
        hm = h2 * mask
        ssum_ref[...] += jnp.sum(hm, axis=0, keepdims=True)
        ssq_ref[...] += jnp.sum(hm * hm, axis=0, keepdims=True)

    def _batchnorm(h2_all):
        inv_n = 1.0 / float(num_nodes)
        mean = ssum_ref[...] * inv_n
        var = ssq_ref[...] * inv_n - mean * mean          # biased variance
        scale = gamma_ref[0] * jax.lax.rsqrt(var + _BN_EPS)
        shift = beta_ref[0] - mean * scale
        return h2_all * scale + shift

    layer_done = (i == n_i - 1) & (k == n_k - 1)

    # End-of-layer epilogue (all but last layer): BN + ReLU back into h.
    @pl.when(layer_done & (l < num_layers - 1))
    def _bn_relu():
        h_ref[...] = jnp.maximum(_batchnorm(h2_ref[...]), 0.0)

    # Last layer: BN only (dropout is identity in eval mode); write the output
    # (output block index is constant -> resident, flushed once at grid end).
    @pl.when(layer_done & (l == num_layers - 1))
    def _bn_out():
        hn = _batchnorm(h2_ref[...])
        h_ref[...] = hn
        o_ref[...] = hn


def _choose_tiles(n, tile=None):
    """Pick the aggregation tile size (multiple of 128) and padded node count."""
    tile = 512 if tile is None else tile
    assert tile % 128 == 0, "tile must be a multiple of 128"
    t = min(tile, _round_up(n, 128))
    n_pad = _round_up(n, t)
    return n_pad, t, t


def gin_encoder_fused(x0, a, w1, b1, w2, b2, gamma, beta, *, num_nodes, tm, tk):
    """One pallas_call running all GIN layers. Inputs already padded/stacked."""
    num_layers, d, _ = w1.shape
    n_pad = x0.shape[0]
    grid = (num_layers, n_pad // tm, n_pad // tk)

    kernel = functools.partial(_fused_gin_kernel, num_nodes=num_nodes,
                               num_layers=num_layers, tm=tm, tk=tk)

    # VMEM budget: double-buffered A tiles + resident x0/out + scratches + weights.
    vmem_bytes = (2 * tm * tk * 2            # A tiles (bf16), double buffered
                  + 2 * n_pad * d * 4        # x0 + output residency
                  + 2 * n_pad * d * 4        # h + h2 scratch
                  + tm * d * 4               # aggregation accumulator
                  + 2 * 2 * d * d * 4        # w1 + w2, double buffered
                  + 8 * 2 * d * 4            # biases / BN params
                  + 2 * d * 4)               # running stats
    vmem_limit = int(min(max(2 * vmem_bytes, 32 * 1024 * 1024),
                         100 * 1024 * 1024))

    return pl.pallas_call(
        kernel,
        grid=grid,
        in_specs=[
            pl.BlockSpec((n_pad, d), lambda l, i, k: (0, 0)),      # x0 (resident)
            pl.BlockSpec((tm, tk), lambda l, i, k: (i, k)),        # A tile (bf16)
            pl.BlockSpec((1, d, d), lambda l, i, k: (l, 0, 0)),    # W1[l]
            pl.BlockSpec((1, 1, d), lambda l, i, k: (l, 0, 0)),    # b1[l]
            pl.BlockSpec((1, d, d), lambda l, i, k: (l, 0, 0)),    # W2[l]
            pl.BlockSpec((1, 1, d), lambda l, i, k: (l, 0, 0)),    # b2[l]
            pl.BlockSpec((1, 1, d), lambda l, i, k: (l, 0, 0)),    # gamma[l]
            pl.BlockSpec((1, 1, d), lambda l, i, k: (l, 0, 0)),    # beta[l]
        ],
        out_specs=pl.BlockSpec((n_pad, d), lambda l, i, k: (0, 0)),  # resident
        out_shape=jax.ShapeDtypeStruct((n_pad, d), jnp.float32),
        scratch_shapes=[
            pltpu.VMEM((tm, d), jnp.float32),      # aggregation accumulator
            pltpu.VMEM((n_pad, d), jnp.float32),   # resident layer input h
            pltpu.VMEM((n_pad, d), jnp.float32),   # pre-BN activations h2
            pltpu.VMEM((1, d), jnp.float32),       # running sum
            pltpu.VMEM((1, d), jnp.float32),       # running sum of squares
        ],
        compiler_params=pltpu.CompilerParams(
            # Row tiles share the BN statistics and the resident h buffer, so
            # every grid axis must stay sequential on one TensorCore.
            dimension_semantics=("arbitrary", "arbitrary", "arbitrary"),
            vmem_limit_bytes=vmem_limit,
        ),
    )(x0, a, w1, b1, w2, b2, gamma, beta)


def gnn_encoder_forward(params, nodes, edge_index, graph_indicator, *, tile=None):
    """Matches GNN_encoder.forward (gnn_name='gin', eval mode)."""
    del graph_indicator                    # unused by the reference forward
    n, nfs = nodes.shape
    emb = params[0]['w1'].shape[1]
    d = max(_round_up(nfs, 128), _round_up(emb, 128))   # lane-dense feature width
    n_pad, tm, tk = _choose_tiles(n, tile)

    # Dense adjacency: A[dst, src] += 1  =>  (A @ h)[i] = sum over incoming edges.
    src, dst = edge_index[0], edge_index[1]
    a = jnp.zeros((n_pad, n_pad), jnp.float32).at[dst, src].add(1.0)
    a = a.astype(jnp.bfloat16)             # exact for edge multiplicities < 256

    # Zero-pad features to width d and nodes to n_pad rows.
    x0 = jnp.zeros((n_pad, d), jnp.float32).at[:n, :nfs].set(
        nodes.astype(jnp.float32))

    def pad_w(w):
        return jnp.zeros((d, d), jnp.float32).at[:w.shape[0], :w.shape[1]].set(w)

    def pad_v(v):
        return jnp.zeros((1, d), jnp.float32).at[0, :v.shape[0]].set(v)

    w1 = jnp.stack([pad_w(p['w1']) for p in params])
    w2 = jnp.stack([pad_w(p['w2']) for p in params])
    b1 = jnp.stack([pad_v(p['b1']) for p in params])
    b2 = jnp.stack([pad_v(p['b2']) for p in params])
    gamma = jnp.stack([pad_v(p['gamma']) for p in params])
    beta = jnp.stack([pad_v(p['beta']) for p in params])

    out = gin_encoder_fused(x0, a, w1, b1, w2, b2, gamma, beta,
                            num_nodes=n, tm=tm, tk=tk)
    return out[:n, :emb]


def init_params(key, num_layer, emb_dim, node_feature_size):
    """Deterministic parameter init (PyTorch-Linear-style uniform bounds)."""
    params = []
    for layer in range(num_layer):
        din = node_feature_size if layer == 0 else emb_dim
        key, k1, k2, k3, k4 = jax.random.split(key, 5)
        bound1 = 1.0 / (din ** 0.5)
        bound2 = 1.0 / (emb_dim ** 0.5)
        params.append(dict(
            w1=jax.random.uniform(k1, (din, emb_dim), jnp.float32, -bound1, bound1),
            b1=jax.random.uniform(k2, (emb_dim,), jnp.float32, -bound1, bound1),
            w2=jax.random.uniform(k3, (emb_dim, emb_dim), jnp.float32, -bound2, bound2),
            b2=jax.random.uniform(k4, (emb_dim,), jnp.float32, -bound2, bound2),
            gamma=jnp.ones((emb_dim,), jnp.float32),    # BatchNorm1d weight
            beta=jnp.zeros((emb_dim,), jnp.float32),    # BatchNorm1d bias
        ))
    return params


def _reference_forward(params, nodes, edge_index):
    """Pure-JAX reference mirroring the PyTorch forward (eval mode)."""
    n = nodes.shape[0]
    src, dst = edge_index[0], edge_index[1]
    a = jnp.zeros((n, n), jnp.float32).at[dst, src].add(1.0)
    num_layer = len(params)
    hp = jax.lax.Precision.HIGHEST
    h = nodes.astype(jnp.float32)
    for layer, p in enumerate(params):
        z = h + jnp.dot(a, h, precision=hp)
        h1 = jnp.maximum(jnp.dot(z, p['w1'], precision=hp) + p['b1'], 0.0)
        h2 = jnp.dot(h1, p['w2'], precision=hp) + p['b2']
        mean = h2.mean(0, keepdims=True)
        var = ((h2 - mean) ** 2).mean(0, keepdims=True)
        h = (h2 - mean) / jnp.sqrt(var + _BN_EPS) * p['gamma'] + p['beta']
        if layer != num_layer - 1:
            h = jnp.maximum(h, 0.0)
    return h


if __name__ == "__main__":
    num_layer = 3
    emb_dim = 32
    node_feature_size = 2

    key = jax.random.PRNGKey(0)
    k_params, k_nodes1, k_edges1, k_nodes2, k_edges2 = jax.random.split(key, 5)
    params = init_params(k_params, num_layer, emb_dim, node_feature_size)

    # Case 1: small graph (single aggregation tile, exercises row/col padding).
    n1, e1 = 20, 60
    nodes1 = jax.random.normal(k_nodes1, (n1, node_feature_size), jnp.float32)
    edges1 = jax.random.randint(k_edges1, (2, e1), 0, n1, jnp.int32)
    gi1 = jnp.zeros((n1,), jnp.int32)
    out1 = jax.block_until_ready(gnn_encoder_forward(params, nodes1, edges1, gi1))
    ref1 = _reference_forward(params, nodes1, edges1)
    assert out1.shape == (n1, emb_dim)
    assert jnp.allclose(out1, ref1, atol=5e-4, rtol=5e-4), "mismatch (single tile)"

    # Case 2: forces the tiled aggregation / multi-row-tile BatchNorm path.
    n2, e2 = 200, 600
    nodes2 = jax.random.normal(k_nodes2, (n2, node_feature_size), jnp.float32)
    edges2 = jax.random.randint(k_edges2, (2, e2), 0, n2, jnp.int32)
    gi2 = jnp.zeros((n2,), jnp.int32)
    out2 = jax.block_until_ready(
        gnn_encoder_forward(params, nodes2, edges2, gi2, tile=128))
    ref2 = _reference_forward(params, nodes2, edges2)
    assert out2.shape == (n2, emb_dim)
    assert jnp.allclose(out2, ref2, atol=5e-4, rtol=5e-4), "mismatch (tiled)"

    print("KERNEL_OK")
</pallas_src>

<mosaic_0001>
module attributes {stable_mosaic.version = 11 : i64} {
  func.func @_fused_gin_kernel(%arg0: i32, %arg1: i32, %arg2: i32, %arg3: memref<128x128xf32, #tpu.memory_space<vmem>>, %arg4: memref<128x128xbf16, #tpu.memory_space<vmem>>, %arg5: memref<1x128x128xf32, #tpu.memory_space<vmem>>, %arg6: memref<1x1x128xf32, #tpu.memory_space<vmem>>, %arg7: memref<1x128x128xf32, #tpu.memory_space<vmem>>, %arg8: memref<1x1x128xf32, #tpu.memory_space<vmem>>, %arg9: memref<1x1x128xf32, #tpu.memory_space<vmem>>, %arg10: memref<1x1x128xf32, #tpu.memory_space<vmem>>, %arg11: memref<128x128xf32, #tpu.memory_space<vmem>>, %arg12: memref<128x128xf32, #tpu.memory_space<vmem>>, %arg13: memref<128x128xf32, #tpu.memory_space<vmem>>, %arg14: memref<128x128xf32, #tpu.memory_space<vmem>>, %arg15: memref<1x128xf32, #tpu.memory_space<vmem>>, %arg16: memref<1x128xf32, #tpu.memory_space<vmem>>) attributes {dimension_semantics = [#tpu.dimension_semantics<arbitrary>, #tpu.dimension_semantics<arbitrary>, #tpu.dimension_semantics<arbitrary>], iteration_bounds = array<i64: 3, 1, 1>, scalar_prefetch = 0 : i64, scratch_operands = 5 : i64, tpu.core_type = #tpu.core_type<tc>, window_params = [{pipeline_mode = #tpu.pipeline_mode<synchronous>, transform_indices = @transform_0, window_bounds = array<i64: 128, 128>}, {transform_indices = @transform_1, window_bounds = array<i64: 128, 128>}, {transform_indices = @transform_2, window_bounds = array<i64: 1, 128, 128>}, {transform_indices = @transform_3, window_bounds = array<i64: 1, 1, 128>}, {transform_indices = @transform_4, window_bounds = array<i64: 1, 128, 128>}, {transform_indices = @transform_5, window_bounds = array<i64: 1, 1, 128>}, {transform_indices = @transform_6, window_bounds = array<i64: 1, 1, 128>}, {transform_indices = @transform_7, window_bounds = array<i64: 1, 1, 128>}, {pipeline_mode = #tpu.pipeline_mode<synchronous>, transform_indices = @transform_8, window_bounds = array<i64: 128, 128>}]} {
    %c128_i32 = arith.constant 128 : i32
    %0 = arith.muli %arg1, %c128_i32 : i32
    %1 = tpu.assume_multiple %0, 128 : i32
    %c128_i32_0 = arith.constant 128 : i32
    %2 = arith.muli %arg2, %c128_i32_0 : i32
    %3 = tpu.assume_multiple %2, 128 : i32
    %c0_i32 = arith.constant 0 : i32
    %4 = arith.cmpi eq, %arg0, %c0_i32 : i32
    %c0_i32_1 = arith.constant 0 : i32
    %5 = arith.cmpi eq, %arg1, %c0_i32_1 : i32
    %6 = arith.andi %4, %5 : i1
    %c0_i32_2 = arith.constant 0 : i32
    %7 = arith.cmpi eq, %arg2, %c0_i32_2 : i32
    %8 = arith.andi %6, %7 : i1
    %9 = arith.extui %8 : i1 to i32
    %c0_i32_3 = arith.constant 0 : i32
    %10 = arith.cmpi ne, %9, %c0_i32_3 : i32
    scf.if %10 {
      %c0_22 = arith.constant 0 : index
      %c0_23 = arith.constant 0 : index
      %41 = vector.load %arg3[%c0_22, %c0_23] : memref<128x128xf32, #tpu.memory_space<vmem>>, vector<128x128xf32>
      %c0_24 = arith.constant 0 : index
      %c0_25 = arith.constant 0 : index
      %42 = vector.load %arg13[%c0_24, %c0_25] : memref<128x128xf32, #tpu.memory_space<vmem>>, vector<128x128xf32>
      tpu.vector_store %arg13[%c0_24, %c0_25], %41 {strides = array<i32>} : memref<128x128xf32, #tpu.memory_space<vmem>>, vector<128x128xf32>,
    } else {
    }
    %c0_i32_4 = arith.constant 0 : i32
    %11 = arith.cmpi eq, %arg1, %c0_i32_4 : i32
    %c0_i32_5 = arith.constant 0 : i32
    %12 = arith.cmpi eq, %arg2, %c0_i32_5 : i32
    %13 = arith.andi %11, %12 : i1
    %14 = arith.extui %13 : i1 to i32
    %c0_i32_6 = arith.constant 0 : i32
    %15 = arith.cmpi ne, %14, %c0_i32_6 : i32
    scf.if %15 {
      %cst_22 = arith.constant 0.000000e+00 : f32
      %41 = vector.broadcast %cst_22 : f32 to vector<1x128xf32>
      %c0_23 = arith.constant 0 : index
      %c0_24 = arith.constant 0 : index
      %42 = vector.load %arg15[%c0_23, %c0_24] : memref<1x128xf32, #tpu.memory_space<vmem>>, vector<1x128xf32>
      tpu.vector_store %arg15[%c0_23, %c0_24], %41 {strides = array<i32>} : memref<1x128xf32, #tpu.memory_space<vmem>>, vector<1x128xf32>,
      %cst_25 = arith.constant 0.000000e+00 : f32
      %43 = vector.broadcast %cst_25 : f32 to vector<1x128xf32>
      %c0_26 = arith.constant 0 : index
      %c0_27 = arith.constant 0 : index
      %44 = vector.load %arg16[%c0_26, %c0_27] : memref<1x128xf32, #tpu.memory_space<vmem>>, vector<1x128xf32>
      tpu.vector_store %arg16[%c0_26, %c0_27], %43 {strides = array<i32>} : memref<1x128xf32, #tpu.memory_space<vmem>>, vector<1x128xf32>,
    } else {
    }
    %c0_i32_7 = arith.constant 0 : i32
    %16 = arith.cmpi eq, %arg2, %c0_i32_7 : i32
    %17 = arith.extui %16 : i1 to i32
    %c0_i32_8 = arith.constant 0 : i32
    %18 = arith.cmpi ne, %17, %c0_i32_8 : i32
    scf.if %18 {
      %41 = arith.index_cast %1 : i32 to index
      %c0_22 = arith.constant 0 : index
      %42 = vector.load %arg13[%41, %c0_22] : memref<128x128xf32, #tpu.memory_space<vmem>>, vector<128x128xf32>
      %c0_23 = arith.constant 0 : index
      %c0_24 = arith.constant 0 : index
      %43 = vector.load %arg12[%c0_23, %c0_24] : memref<128x128xf32, #tpu.memory_space<vmem>>, vector<128x128xf32>
      tpu.vector_store %arg12[%c0_23, %c0_24], %42 {strides = array<i32>} : memref<128x128xf32, #tpu.memory_space<vmem>>, vector<128x128xf32>,
    } else {
    }
    %c0 = arith.constant 0 : index
    %c0_9 = arith.constant 0 : index
    %19 = vector.load %arg4[%c0, %c0_9] : memref<128x128xbf16, #tpu.memory_space<vmem>>, vector<128x128xbf16>
    %20 = arith.extf %19 : vector<128x128xbf16> to vector<128x128xf32>
    %c0_10 = arith.constant 0 : index
    %c0_11 = arith.constant 0 : index
    %21 = vector.load %arg12[%c0_10, %c0_11] : memref<128x128xf32, #tpu.memory_space<vmem>>, vector<128x128xf32>
    %22 = arith.index_cast %3 : i32 to index
    %c0_12 = arith.constant 0 : index
    %23 = vector.load %arg13[%22, %c0_12] : memref<128x128xf32, #tpu.memory_space<vmem>>, vector<128x128xf32>
    %cst = arith.constant dense<0.000000e+00> : vector<128x128xf32>
    %24 = tpu.matmul %20, %23, %cst {dimension_numbers = #tpu.dot_dimension_numbers<[1], [0], [0], [1], [0, 0, 1, 1], [], []>} : vector<128x128xf32>, vector<128x128xf32>, vector<128x128xf32> -> vector<128x128xf32>
    %25 = arith.addf %21, %24 : vector<128x128xf32>
    %c0_13 = arith.constant 0 : index
    %c0_14 = arith.constant 0 : index
    %26 = vector.load %arg12[%c0_13, %c0_14] : memref<128x128xf32, #tpu.memory_space<vmem>>, vector<128x128xf32>
    tpu.vector_store %arg12[%c0_13, %c0_14], %25 {strides = array<i32>} : memref<128x128xf32, #tpu.memory_space<vmem>>, vector<128x128xf32>,
    %c0_i32_15 = arith.constant 0 : i32
    %27 = arith.cmpi eq, %arg2, %c0_i32_15 : i32
    %28 = arith.extui %27 : i1 to i32
    %c0_i32_16 = arith.constant 0 : i32
    %29 = arith.cmpi ne, %28, %c0_i32_16 : i32
    scf.if %29 {
      %c0_22 = arith.constant 0 : index
      %c0_23 = arith.constant 0 : index
      %41 = vector.load %arg12[%c0_22, %c0_23] : memref<128x128xf32, #tpu.memory_space<vmem>>, vector<128x128xf32>
      %c0_24 = arith.constant 0 : index
      %c0_25 = arith.constant 0 : index
      %c0_26 = arith.constant 0 : index
      %42 = vector.load %arg5[%c0_24, %c0_25, %c0_26] : memref<1x128x128xf32, #tpu.memory_space<vmem>>, vector<1x128x128xf32>
      %43 = vector.shape_cast %42 : vector<1x128x128xf32> to vector<128x128xf32>
      %cst_27 = arith.constant dense<0.000000e+00> : vector<128x128xf32>
      %44 = tpu.matmul %41, %43, %cst_27 {dimension_numbers = #tpu.dot_dimension_numbers<[1], [0], [0], [1], [0, 0, 1, 1], [], []>} : vector<128x128xf32>, vector<128x128xf32>, vector<128x128xf32> -> vector<128x128xf32>
      %c0_28 = arith.constant 0 : index
      %c0_29 = arith.constant 0 : index
      %c0_30 = arith.constant 0 : index
      %45 = vector.load %arg6[%c0_28, %c0_29, %c0_30] : memref<1x1x128xf32, #tpu.memory_space<vmem>>, vector<1x1x128xf32>
      %46 = vector.shape_cast %45 : vector<1x1x128xf32> to vector<1x128xf32>
      %47 = vector.broadcast %46 : vector<1x128xf32> to vector<128x128xf32>
      %48 = arith.addf %44, %47 : vector<128x128xf32>
      %cst_31 = arith.constant 0.000000e+00 : f32
      %49 = vector.broadcast %cst_31 : f32 to vector<128x128xf32>
      %50 = arith.maximumf %48, %49 : vector<128x128xf32>
      %c0_32 = arith.constant 0 : index
      %c0_33 = arith.constant 0 : index
      %c0_34 = arith.constant 0 : index
      %51 = vector.load %arg7[%c0_32, %c0_33, %c0_34] : memref<1x128x128xf32, #tpu.memory_space<vmem>>, vector<1x128x128xf32>
      %52 = vector.shape_cast %51 : vector<1x128x128xf32> to vector<128x128xf32>
      %cst_35 = arith.constant dense<0.000000e+00> : vector<128x128xf32>
      %53 = tpu.matmul %50, %52, %cst_35 {dimension_numbers = #tpu.dot_dimension_numbers<[1], [0], [0], [1], [0, 0, 1, 1], [], []>} : vector<128x128xf32>, vector<128x128xf32>, vector<128x128xf32> -> vector<128x128xf32>
      %c0_36 = arith.constant 0 : index
      %c0_37 = arith.constant 0 : index
      %c0_38 = arith.constant 0 : index
      %54 = vector.load %arg8[%c0_36, %c0_37, %c0_38] : memref<1x1x128xf32, #tpu.memory_space<vmem>>, vector<1x1x128xf32>
      %55 = vector.shape_cast %54 : vector<1x1x128xf32> to vector<1x128xf32>
      %56 = vector.broadcast %55 : vector<1x128xf32> to vector<128x128xf32>
      %57 = arith.addf %53, %56 : vector<128x128xf32>
      %58 = arith.index_cast %1 : i32 to index
      %c0_39 = arith.constant 0 : index
      %59 = vector.load %arg14[%58, %c0_39] : memref<128x128xf32, #tpu.memory_space<vmem>>, vector<128x128xf32>
      tpu.vector_store %arg14[%58, %c0_39], %57 {strides = array<i32>} : memref<128x128xf32, #tpu.memory_space<vmem>>, vector<128x128xf32>,
      %60 = tpu.iota {dimensions = array<i32: 0>} : vector<128x1xi32>
      %61 = vector.broadcast %1 : i32 to vector<128x1xi32>
      %62 = arith.addi %60, %61 : vector<128x1xi32>
      %c20_i32 = arith.constant 20 : i32
      %63 = vector.broadcast %c20_i32 : i32 to vector<128x1xi32>
      %64 = arith.cmpi slt, %62, %63 : vector<128x1xi32>
      %65 = arith.extui %64 : vector<128x1xi1> to vector<128x1xi32>
      %66 = arith.sitofp %65 : vector<128x1xi32> to vector<128x1xf32>
      %67 = vector.broadcast %66 : vector<128x1xf32> to vector<128x128xf32>
      %68 = arith.mulf %57, %67 : vector<128x128xf32>
      %c0_40 = arith.constant 0 : index
      %c0_41 = arith.constant 0 : index
      %69 = vector.load %arg15[%c0_40, %c0_41] : memref<1x128xf32, #tpu.memory_space<vmem>>, vector<1x128xf32>
      %cst_42 = arith.constant dense<0.000000e+00> : vector<128xf32>
      %70 = vector.multi_reduction <add>, %68, %cst_42 [0] : vector<128x128xf32> to vector<128xf32>
      %71 = vector.shape_cast %70 : vector<128xf32> to vector<1x128xf32>
      %72 = arith.addf %69, %71 : vector<1x128xf32>
      %c0_43 = arith.constant 0 : index
      %c0_44 = arith.constant 0 : index
      %73 = vector.load %arg15[%c0_43, %c0_44] : memref<1x128xf32, #tpu.memory_space<vmem>>, vector<1x128xf32>
      tpu.vector_store %arg15[%c0_43, %c0_44], %72 {strides = array<i32>} : memref<1x128xf32, #tpu.memory_space<vmem>>, vector<1x128xf32>,
      %c0_45 = arith.constant 0 : index
      %c0_46 = arith.constant 0 : index
      %74 = vector.load %arg16[%c0_45, %c0_46] : memref<1x128xf32, #tpu.memory_space<vmem>>, vector<1x128xf32>
      %75 = arith.mulf %68, %68 : vector<128x128xf32>
      %cst_47 = arith.constant dense<0.000000e+00> : vector<128xf32>
      %76 = vector.multi_reduction <add>, %75, %cst_47 [0] : vector<128x128xf32> to vector<128xf32>
      %77 = vector.shape_cast %76 : vector<128xf32> to vector<1x128xf32>
      %78 = arith.addf %74, %77 : vector<1x128xf32>
      %c0_48 = arith.constant 0 : index
      %c0_49 = arith.constant 0 : index
      %79 = vector.load %arg16[%c0_48, %c0_49] : memref<1x128xf32, #tpu.memory_space<vmem>>, vector<1x128xf32>
      tpu.vector_store %arg16[%c0_48, %c0_49], %78 {strides = array<i32>} : memref<1x128xf32, #tpu.memory_space<vmem>>, vector<1x128xf32>,
    } else {
    }
    %c0_i32_17 = arith.constant 0 : i32
    %30 = arith.cmpi eq, %arg1, %c0_i32_17 : i32
    %c0_i32_18 = arith.constant 0 : i32
    %31 = arith.cmpi eq, %arg2, %c0_i32_18 : i32
    %32 = arith.andi %30, %31 : i1
    %c2_i32 = arith.constant 2 : i32
    %33 = arith.cmpi slt, %arg0, %c2_i32 : i32
    %34 = arith.andi %32, %33 : i1
    %35 = arith.extui %34 : i1 to i32
    %c0_i32_19 = arith.constant 0 : i32
    %36 = arith.cmpi ne, %35, %c0_i32_19 : i32
    scf.if %36 {
      %c0_22 = arith.constant 0 : index
      %c0_23 = arith.constant 0 : index
      %41 = vector.load %arg14[%c0_22, %c0_23] : memref<128x128xf32, #tpu.memory_space<vmem>>, vector<128x128xf32>
      %c0_24 = arith.constant 0 : index
      %c0_25 = arith.constant 0 : index
      %42 = vector.load %arg15[%c0_24, %c0_25] : memref<1x128xf32, #tpu.memory_space<vmem>>, vector<1x128xf32>
      %cst_26 = arith.constant 5.000000e-02 : f32
      %43 = vector.broadcast %cst_26 : f32 to vector<1x128xf32>
      %44 = arith.mulf %42, %43 : vector<1x128xf32>
      %c0_27 = arith.constant 0 : index
      %c0_28 = arith.constant 0 : index
      %45 = vector.load %arg16[%c0_27, %c0_28] : memref<1x128xf32, #tpu.memory_space<vmem>>, vector<1x128xf32>
      %cst_29 = arith.constant 5.000000e-02 : f32
      %46 = vector.broadcast %cst_29 : f32 to vector<1x128xf32>
      %47 = arith.mulf %45, %46 : vector<1x128xf32>
      %48 = arith.mulf %44, %44 : vector<1x128xf32>
      %49 = arith.subf %47, %48 : vector<1x128xf32>
      %c0_30 = arith.constant 0 : index
      %c0_31 = arith.constant 0 : index
      %c0_32 = arith.constant 0 : index
      %50 = vector.load %arg9[%c0_30, %c0_31, %c0_32] : memref<1x1x128xf32, #tpu.memory_space<vmem>>, vector<1x1x128xf32>
      %51 = vector.shape_cast %50 : vector<1x1x128xf32> to vector<1x128xf32>
      %cst_33 = arith.constant 9.99999974E-6 : f32
      %52 = vector.broadcast %cst_33 : f32 to vector<1x128xf32>
      %53 = arith.addf %49, %52 : vector<1x128xf32>
      %54 = math.rsqrt %53 : vector<1x128xf32>
      %55 = arith.mulf %51, %54 : vector<1x128xf32>
      %c0_34 = arith.constant 0 : index
      %c0_35 = arith.constant 0 : index
      %c0_36 = arith.constant 0 : index
      %56 = vector.load %arg10[%c0_34, %c0_35, %c0_36] : memref<1x1x128xf32, #tpu.memory_space<vmem>>, vector<1x1x128xf32>
      %57 = vector.shape_cast %56 : vector<1x1x128xf32> to vector<1x128xf32>
      %58 = arith.mulf %44, %55 : vector<1x128xf32>
      %59 = arith.subf %57, %58 : vector<1x128xf32>
      %60 = vector.broadcast %55 : vector<1x128xf32> to vector<128x128xf32>
      %61 = arith.mulf %41, %60 : vector<128x128xf32>
      %62 = vector.broadcast %59 : vector<1x128xf32> to vector<128x128xf32>
      %63 = arith.addf %61, %62 : vector<128x128xf32>
      %cst_37 = arith.constant 0.000000e+00 : f32
      %64 = vector.broadcast %cst_37 : f32 to vector<128x128xf32>
      %65 = arith.maximumf %63, %64 : vector<128x128xf32>
      %c0_38 = arith.constant 0 : index
      %c0_39 = arith.constant 0 : index
      %66 = vector.load %arg13[%c0_38, %c0_39] : memref<128x128xf32, #tpu.memory_space<vmem>>, vector<128x128xf32>
      tpu.vector_store %arg13[%c0_38, %c0_39], %65 {strides = array<i32>} : memref<128x128xf32, #tpu.memory_space<vmem>>, vector<128x128xf32>,
    } else {
    }
    %c2_i32_20 = arith.constant 2 : i32
    %37 = arith.cmpi eq, %arg0, %c2_i32_20 : i32
    %38 = arith.andi %32, %37 : i1
    %39 = arith.extui %38 : i1 to i32
    %c0_i32_21 = arith.constant 0 : i32
    %40 = arith.cmpi ne, %39, %c0_i32_21 : i32
    scf.if %40 {
      %c0_22 = arith.constant 0 : index
      %c0_23 = arith.constant 0 : index
      %41 = vector.load %arg14[%c0_22, %c0_23] : memref<128x128xf32, #tpu.memory_space<vmem>>, vector<128x128xf32>
      %c0_24 = arith.constant 0 : index
      %c0_25 = arith.constant 0 : index
      %42 = vector.load %arg15[%c0_24, %c0_25] : memref<1x128xf32, #tpu.memory_space<vmem>>, vector<1x128xf32>
      %cst_26 = arith.constant 5.000000e-02 : f32
      %43 = vector.broadcast %cst_26 : f32 to vector<1x128xf32>
      %44 = arith.mulf %42, %43 : vector<1x128xf32>
      %c0_27 = arith.constant 0 : index
      %c0_28 = arith.constant 0 : index
      %45 = vector.load %arg16[%c0_27, %c0_28] : memref<1x128xf32, #tpu.memory_space<vmem>>, vector<1x128xf32>
      %cst_29 = arith.constant 5.000000e-02 : f32
      %46 = vector.broadcast %cst_29 : f32 to vector<1x128xf32>
      %47 = arith.mulf %45, %46 : vector<1x128xf32>
      %48 = arith.mulf %44, %44 : vector<1x128xf32>
      %49 = arith.subf %47, %48 : vector<1x128xf32>
      %c0_30 = arith.constant 0 : index
      %c0_31 = arith.constant 0 : index
      %c0_32 = arith.constant 0 : index
      %50 = vector.load %arg9[%c0_30, %c0_31, %c0_32] : memref<1x1x128xf32, #tpu.memory_space<vmem>>, vector<1x1x128xf32>
      %51 = vector.shape_cast %50 : vector<1x1x128xf32> to vector<1x128xf32>
      %cst_33 = arith.constant 9.99999974E-6 : f32
      %52 = vector.broadcast %cst_33 : f32 to vector<1x128xf32>
      %53 = arith.addf %49, %52 : vector<1x128xf32>
      %54 = math.rsqrt %53 : vector<1x128xf32>
      %55 = arith.mulf %51, %54 : vector<1x128xf32>
      %c0_34 = arith.constant 0 : index
      %c0_35 = arith.constant 0 : index
      %c0_36 = arith.constant 0 : index
      %56 = vector.load %arg10[%c0_34, %c0_35, %c0_36] : memref<1x1x128xf32, #tpu.memory_space<vmem>>, vector<1x1x128xf32>
      %57 = vector.shape_cast %56 : vector<1x1x128xf32> to vector<1x128xf32>
      %58 = arith.mulf %44, %55 : vector<1x128xf32>
      %59 = arith.subf %57, %58 : vector<1x128xf32>
      %60 = vector.broadcast %55 : vector<1x128xf32> to vector<128x128xf32>
      %61 = arith.mulf %41, %60 : vector<128x128xf32>
      %62 = vector.broadcast %59 : vector<1x128xf32> to vector<128x128xf32>
      %63 = arith.addf %61, %62 : vector<128x128xf32>
      %c0_37 = arith.constant 0 : index
      %c0_38 = arith.constant 0 : index
      %64 = vector.load %arg13[%c0_37, %c0_38] : memref<128x128xf32, #tpu.memory_space<vmem>>, vector<128x128xf32>
      tpu.vector_store %arg13[%c0_37, %c0_38], %63 {strides = array<i32>} : memref<128x128xf32, #tpu.memory_space<vmem>>, vector<128x128xf32>,
      %c0_39 = arith.constant 0 : index
      %c0_40 = arith.constant 0 : index
      %65 = vector.load %arg11[%c0_39, %c0_40] : memref<128x128xf32, #tpu.memory_space<vmem>>, vector<128x128xf32>
      tpu.vector_store %arg11[%c0_39, %c0_40], %63 {strides = array<i32>} : memref<128x128xf32, #tpu.memory_space<vmem>>, vector<128x128xf32>,
    } else {
    }
    return
  }
  func.func @transform_0(%arg0: i32, %arg1: i32, %arg2: i32) -> (i32, i32) {
    %c0_i32 = arith.constant 0 : i32
    %c0_i32_0 = arith.constant 0 : i32
    %c0_i32_1 = arith.constant 0 : i32
    return %c0_i32, %c0_i32_0 : i32, i32
  }
  func.func @transform_1(%arg0: i32, %arg1: i32, %arg2: i32) -> (i32, i32) {
    %c0_i32 = arith.constant 0 : i32
    return %arg1, %arg2 : i32, i32
  }
  func.func @transform_2(%arg0: i32, %arg1: i32, %arg2: i32) -> (i32, i32, i32) {
    %c0_i32 = arith.constant 0 : i32
    %c0_i32_0 = arith.constant 0 : i32
    %c0_i32_1 = arith.constant 0 : i32
    return %arg0, %c0_i32, %c0_i32_0 : i32, i32, i32
  }
  func.func @transform_3(%arg0: i32, %arg1: i32, %arg2: i32) -> (i32, i32, i32) {
    %c0_i32 = arith.constant 0 : i32
    %c0_i32_0 = arith.constant 0 : i32
    %c0_i32_1 = arith.constant 0 : i32
    return %arg0, %c0_i32, %c0_i32_0 : i32, i32, i32
  }
  func.func @transform_4(%arg0: i32, %arg1: i32, %arg2: i32) -> (i32, i32, i32) {
    %c0_i32 = arith.constant 0 : i32
    %c0_i32_0 = arith.constant 0 : i32
    %c0_i32_1 = arith.constant 0 : i32
    return %arg0, %c0_i32, %c0_i32_0 : i32, i32, i32
  }
  func.func @transform_5(%arg0: i32, %arg1: i32, %arg2: i32) -> (i32, i32, i32) {
    %c0_i32 = arith.constant 0 : i32
    %c0_i32_0 = arith.constant 0 : i32
    %c0_i32_1 = arith.constant 0 : i32
    return %arg0, %c0_i32, %c0_i32_0 : i32, i32, i32
  }
  func.func @transform_6(%arg0: i32, %arg1: i32, %arg2: i32) -> (i32, i32, i32) {
    %c0_i32 = arith.constant 0 : i32
    %c0_i32_0 = arith.constant 0 : i32
    %c0_i32_1 = arith.constant 0 : i32
    return %arg0, %c0_i32, %c0_i32_0 : i32, i32, i32
  }
  func.func @transform_7(%arg0: i32, %arg1: i32, %arg2: i32) -> (i32, i32, i32) {
    %c0_i32 = arith.constant 0 : i32
    %c0_i32_0 = arith.constant 0 : i32
    %c0_i32_1 = arith.constant 0 : i32
    return %arg0, %c0_i32, %c0_i32_0 : i32, i32, i32
  }
  func.func @transform_8(%arg0: i32, %arg1: i32, %arg2: i32) -> (i32, i32) {
    %c0_i32 = arith.constant 0 : i32
    %c0_i32_0 = arith.constant 0 : i32
    %c0_i32_1 = arith.constant 0 : i32
    return %c0_i32, %c0_i32_0 : i32, i32
  }
}

</mosaic_0001>

<llo_original>
// kernel: tpu_custom_call.1
$region0: #{tpu_custom_call.1}
  #allocation0 [shape = 'u32[]', space=smem, size = 0x4, offset = 0x4, fixed_abs, tag = 'smem constant byte address 0x4 - core index']
  #allocation1 [shape = 'u32[144,128]{1,0:T(1,128)}', space=vmem, size = 0x12000, scoped, tag = 'internal scratch']
  #allocation2 [shape = 'f32[128,128]{1,0:T(8,128)}', space=vmem, size = 0x10000, scoped, tag = 'scratch operand']
  #allocation3 [shape = 'f32[128,128]{1,0:T(8,128)}', space=vmem, size = 0x10000, scoped, tag = 'scratch operand']
  #allocation4 [shape = 'f32[128,128]{1,0:T(8,128)}', space=vmem, size = 0x10000, scoped, tag = 'scratch operand']
  #allocation5 [shape = 'f32[1,128]{1,0:T(1,128)}', space=vmem, size = 0x200, scoped, tag = 'scratch operand']
  #allocation6 [shape = 'f32[1,128]{1,0:T(1,128)}', space=vmem, size = 0x200, scoped, tag = 'scratch operand']
  %s0 = inlined_call_operand.hbm [shape: f32[128,128], index: 0, kind: input, shape index: {}]
  %s1 = inlined_call_operand.hbm [shape: bf16[128,128], index: 1, kind: input, shape index: {}]
  %s2 = inlined_call_operand.hbm [shape: f32[3,128,128], index: 2, kind: input, shape index: {}]
  %s3 = inlined_call_operand.vmem [shape: f32[3,1,128], index: 3, kind: input, shape index: {}]
  %s4 = inlined_call_operand.hbm [shape: f32[3,128,128], index: 4, kind: input, shape index: {}]
  %s5 = inlined_call_operand.vmem [shape: f32[3,1,128], index: 5, kind: input, shape index: {}]
  %s6 = inlined_call_operand.vmem [shape: f32[3,1,128], index: 6, kind: input, shape index: {}]
  %s7 = inlined_call_operand.vmem [shape: f32[3,1,128], index: 7, kind: input, shape index: {}]
  %s8 = inlined_call_operand.hbm [shape: f32[128,128], index: 8, kind: output, shape index: {}]
  %s9 = sld [smem:[#allocation0]]
  $region105: #{tpu_custom_call.1} parent=0
    _
  %s11 = ssub.s32 1, %s9
  %s12 = scalar_select 0, %s11, %s9
  $region1: #{tpu_custom_call.1} parent=0
    #allocation7 [shape = 'u8[65536]{0}', space=vmem, size = 0x10000, scoped, tag = 'input window, operand 0, single buffered']
    #allocation8 [shape = 's32[2]{0}', space=sflag, size = 0x8, scoped, tag = 'scoped memory for tpu_custom_call.1']
    #allocation9 [shape = 's32[2]{0}', space=sflag, size = 0x8, scoped, tag = 'scoped memory for tpu_custom_call.1']
    #allocation10 [shape = 'u8[32768]{0}', space=vmem, size = 0x8000, scoped, tag = 'input window, operand 1, single buffered']
    #allocation11 [shape = 's32[1]{0}', space=sflag, size = 0x4, scoped, tag = 'scoped memory for tpu_custom_call.1']
    #allocation12 [shape = 'u8[131072]{0}', space=vmem, size = 0x20000, scoped, tag = 'input window, operand 2']
    #allocation13 [shape = 'u8[131072]{0}', space=vmem, size = 0x20000, scoped, tag = 'input window, operand 4']
    #allocation14 [shape = 'u8[65536]{0}', space=vmem, size = 0x10000, scoped, tag = 'output window, operand 0, single buffered']
    %13 = vsyncpa [#allocation8], 0
    %14 = vsyncpa [#allocation11], 0
    %15 = vsyncpa [#allocation9], 0
    loop: start=0, step=1, limit=5
    $region2: #{tpu_custom_call.1} parent=1 // loop_pre_header
      _
    $region3: #{tpu_custom_call.1} parent=1 // loop_header
      %s17 = sphi 0, %s21
      %p18 = scmp.ge.s32.totalorder %s17, 5
      %s24 = sphi 0, %s43
      %s25 = sphi 0, %s39
      %s26 = sphi 0, %s35
      %s27 = sphi 0, %s24
      %s28 = sphi 0, %s25
      %s29 = sphi 0, %s26
      %s30 = sphi 0, %s27
      %s31 = sphi 0, %s28
      %s32 = sphi 0, %s29
      %s44 = sphi 0, %s44
      %s46 = sphi 0, %s44
      %s47 = sphi 0, %s46
      %s61 = sphi 0, %s47
      %s69 = sphi 0, %s71
      %s72 = sphi 0, %s69
      %s73 = sphi 0, %s72
      %s89 = sphi 0, %s73
      %s95 = sphi 0, %s97
      %s98 = sphi 0, %s95
      %s99 = sphi 0, %s98
      %s115 = sphi 0, %s99
      %s121 = sphi 0, %s123
      %s124 = sphi 0, %s121
      %s125 = sphi 0, %s124
      %s141 = sphi 0, %s125
      %s147 = sphi 0, %s149
      %s150 = sphi 0, %s147
      %s151 = sphi 0, %s150
      %s167 = sphi 0, %s151
      %s173 = sphi 0, %s175
      %s176 = sphi 0, %s173
      %s177 = sphi 0, %s176
      %s193 = sphi 0, %s177
      %s199 = sphi 0, %s201
      %s202 = sphi 0, %s199
      %s203 = sphi 0, %s202
      %s219 = sphi 0, %s203
      %s225 = sphi 0, %s227
      %s228 = sphi 0, %s225
      %s229 = sphi 0, %s228
      %s245 = sphi 0, %s229
      %s249 = sphi 0, %s249
      %s251 = sphi 0, %s249
      %s252 = sphi 0, %s251
      %s266 = sphi 0, %s252
    $region4: #{tpu_custom_call.1} parent=1 // loop_header_branch
      %20 = sbr.rel (%p18) target = $region8
    $region5: #{tpu_custom_call.1} parent=1 // loop_body
      %s22 = ssub.s32 %s17, 1
      %s23 = ssub.s32 %s17, 2
      %s33 = sadd.s32 1, %s26
      %p34 = scmp.ge.s32.totalorder %s33, 1
      %s35 = scalar_select %p34, 0, %s33
      %s36 = sadd.s32 1, %s25
      %s37 = scalar_select %p34, %s36, %s25
      %p38 = scmp.ge.s32.totalorder %s37, 1
      %s39 = scalar_select %p38, 0, %s37
      %s40 = sadd.s32 1, %s24
      %s41 = scalar_select %p38, %s40, %s24
      %p42 = scmp.ge.s32.totalorder %s41, 3
      %s43 = scalar_select %p42, 0, %s41
      %s45 = sadd.s32 %s44, 1
      %p48 = scmp.eq.s32.totalorder %s17, 2
      %p49 = scmp.ne.s32.totalorder %s44, %s46
      %p50 = scmp.eq.s32.totalorder %s17, 0
      %p51 = por %p49, %p50
      %p52 = scmp.ne.s32.totalorder %s44, %s46
      %p53 = scmp.eq.s32.totalorder %s22, 2
      %p54 = por %p52, %p53
      %p55 = scmp.ne.s32.totalorder %s46, %s47
      %p56 = scmp.eq.s32.totalorder %s22, 0
      %p57 = por %p55, %p56
      %p58 = scmp.ne.s32.totalorder %s46, %s47
      %p59 = scmp.eq.s32.totalorder %s23, 2
      %p60 = por %p58, %p59
      %p62 = scmp.ne.s32.totalorder %s47, %s61
      %p63 = scmp.eq.s32.totalorder %s23, 0
      %p64 = por %p62, %p63
      %s65 = ssub.s32 %s25, %s39
      %s66 = ssub.s32 %s26, %s35
      %s67 = sor.u32 %s65, %s66
      %p68 = scmp.eq.s32.totalorder %s67, 0
      %s70 = sadd.s32 %s69, 1
      %s71 = scalar_select %p68, %s69, %s70
      %p74 = pneg %p68
      %p75 = scmp.eq.s32.totalorder %s17, 2
      %p76 = por %p74, %p75
      %p77 = scmp.ne.s32.totalorder %s69, %s72
      %p78 = scmp.eq.s32.totalorder %s17, 0
      %p79 = por %p77, %p78
      %p80 = scmp.ne.s32.totalorder %s69, %s72
      %p81 = scmp.eq.s32.totalorder %s22, 2
      %p82 = por %p80, %p81
      %p83 = scmp.ne.s32.totalorder %s72, %s73
      %p84 = scmp.eq.s32.totalorder %s22, 0
      %p85 = por %p83, %p84
      %p86 = scmp.ne.s32.totalorder %s72, %s73
      %p87 = scmp.eq.s32.totalorder %s23, 2
      %p88 = por %p86, %p87
      %p90 = scmp.ne.s32.totalorder %s73, %s89
      %p91 = scmp.eq.s32.totalorder %s23, 0
      %p92 = por %p90, %p91
      %s93 = ssub.s32 %s24, %s43
      %p94 = scmp.eq.s32.totalorder %s93, 0
      %s96 = sadd.s32 %s95, 1
      %s97 = scalar_select %p94, %s95, %s96
      %p100 = pneg %p94
      %p101 = scmp.eq.s32.totalorder %s17, 2
      %p102 = por %p100, %p101
      %p103 = scmp.ne.s32.totalorder %s95, %s98
      %p104 = scmp.eq.s32.totalorder %s17, 0
      %p105 = por %p103, %p104
      %p106 = scmp.ne.s32.totalorder %s95, %s98
      %p107 = scmp.eq.s32.totalorder %s22, 2
      %p108 = por %p106, %p107
      %p109 = scmp.ne.s32.totalorder %s98, %s99
      %p110 = scmp.eq.s32.totalorder %s22, 0
      %p111 = por %p109, %p110
      %p112 = scmp.ne.s32.totalorder %s98, %s99
      %p113 = scmp.eq.s32.totalorder %s23, 2
      %p114 = por %p112, %p113
      %p116 = scmp.ne.s32.totalorder %s99, %s115
      %p117 = scmp.eq.s32.totalorder %s23, 0
      %p118 = por %p116, %p117
      %s119 = ssub.s32 %s24, %s43
      %p120 = scmp.eq.s32.totalorder %s119, 0
      %s122 = sadd.s32 %s121, 1
      %s123 = scalar_select %p120, %s121, %s122
      %p126 = pneg %p120
      %p127 = scmp.eq.s32.totalorder %s17, 2
      %p128 = por %p126, %p127
      %p129 = scmp.ne.s32.totalorder %s121, %s124
      %p130 = scmp.eq.s32.totalorder %s17, 0
      %p131 = por %p129, %p130
      %p132 = scmp.ne.s32.totalorder %s121, %s124
      %p133 = scmp.eq.s32.totalorder %s22, 2
      %p134 = por %p132, %p133
      %p135 = scmp.ne.s32.totalorder %s124, %s125
      %p136 = scmp.eq.s32.totalorder %s22, 0
      %p137 = por %p135, %p136
      %p138 = scmp.ne.s32.totalorder %s124, %s125
      %p139 = scmp.eq.s32.totalorder %s23, 2
      %p140 = por %p138, %p139
      %p142 = scmp.ne.s32.totalorder %s125, %s141
      %p143 = scmp.eq.s32.totalorder %s23, 0
      %p144 = por %p142, %p143
      %s145 = ssub.s32 %s24, %s43
      %p146 = scmp.eq.s32.totalorder %s145, 0
      %s148 = sadd.s32 %s147, 1
      %s149 = scalar_select %p146, %s147, %s148
      %p152 = pneg %p146
      %p153 = scmp.eq.s32.totalorder %s17, 2
      %p154 = por %p152, %p153
      %p155 = scmp.ne.s32.totalorder %s147, %s150
      %p156 = scmp.eq.s32.totalorder %s17, 0
      %p157 = por %p155, %p156
      %p158 = scmp.ne.s32.totalorder %s147, %s150
      %p159 = scmp.eq.s32.totalorder %s22, 2
      %p160 = por %p158, %p159
      %p161 = scmp.ne.s32.totalorder %s150, %s151
      %p162 = scmp.eq.s32.totalorder %s22, 0
      %p163 = por %p161, %p162
      %p164 = scmp.ne.s32.totalorder %s150, %s151
      %p165 = scmp.eq.s32.totalorder %s23, 2
      %p166 = por %p164, %p165
      %p168 = scmp.ne.s32.totalorder %s151, %s167
      %p169 = scmp.eq.s32.totalorder %s23, 0
      %p170 = por %p168, %p169
      %s171 = ssub.s32 %s24, %s43
      %p172 = scmp.eq.s32.totalorder %s171, 0
      %s174 = sadd.s32 %s173, 1
      %s175 = scalar_select %p172, %s173, %s174
      %p178 = pneg %p172
      %p179 = scmp.eq.s32.totalorder %s17, 2
      %p180 = por %p178, %p179
      %p181 = scmp.ne.s32.totalorder %s173, %s176
      %p182 = scmp.eq.s32.totalorder %s17, 0
      %p183 = por %p181, %p182
      %p184 = scmp.ne.s32.totalorder %s173, %s176
      %p185 = scmp.eq.s32.totalorder %s22, 2
      %p186 = por %p184, %p185
      %p187 = scmp.ne.s32.totalorder %s176, %s177
      %p188 = scmp.eq.s32.totalorder %s22, 0
      %p189 = por %p187, %p188
      %p190 = scmp.ne.s32.totalorder %s176, %s177
      %p191 = scmp.eq.s32.totalorder %s23, 2
      %p192 = por %p190, %p191
      %p194 = scmp.ne.s32.totalorder %s177, %s193
      %p195 = scmp.eq.s32.totalorder %s23, 0
      %p196 = por %p194, %p195
      %s197 = ssub.s32 %s24, %s43
      %p198 = scmp.eq.s32.totalorder %s197, 0
      %s200 = sadd.s32 %s199, 1
      %s201 = scalar_select %p198, %s199, %s200
      %p204 = pneg %p198
      %p205 = scmp.eq.s32.totalorder %s17, 2
      %p206 = por %p204, %p205
      %p207 = scmp.ne.s32.totalorder %s199, %s202
      %p208 = scmp.eq.s32.totalorder %s17, 0
      %p209 = por %p207, %p208
      %p210 = scmp.ne.s32.totalorder %s199, %s202
      %p211 = scmp.eq.s32.totalorder %s22, 2
      %p212 = por %p210, %p211
      %p213 = scmp.ne.s32.totalorder %s202, %s203
      %p214 = scmp.eq.s32.totalorder %s22, 0
      %p215 = por %p213, %p214
      %p216 = scmp.ne.s32.totalorder %s202, %s203
      %p217 = scmp.eq.s32.totalorder %s23, 2
      %p218 = por %p216, %p217
      %p220 = scmp.ne.s32.totalorder %s203, %s219
      %p221 = scmp.eq.s32.totalorder %s23, 0
      %p222 = por %p220, %p221
      %s223 = ssub.s32 %s24, %s43
      %p224 = scmp.eq.s32.totalorder %s223, 0
      %s226 = sadd.s32 %s225, 1
      %s227 = scalar_select %p224, %s225, %s226
      %p230 = pneg %p224
      %p231 = scmp.eq.s32.totalorder %s17, 2
      %p232 = por %p230, %p231
      %p233 = scmp.ne.s32.totalorder %s225, %s228
      %p234 = scmp.eq.s32.totalorder %s17, 0
      %p235 = por %p233, %p234
      %p236 = scmp.ne.s32.totalorder %s225, %s228
      %p237 = scmp.eq.s32.totalorder %s22, 2
      %p238 = por %p236, %p237
      %p239 = scmp.ne.s32.totalorder %s228, %s229
      %p240 = scmp.eq.s32.totalorder %s22, 0
      %p241 = por %p239, %p240
      %p242 = scmp.ne.s32.totalorder %s228, %s229
      %p243 = scmp.eq.s32.totalorder %s23, 2
      %p244 = por %p242, %p243
      %p246 = scmp.ne.s32.totalorder %s229, %s245
      %p247 = scmp.eq.s32.totalorder %s23, 0
      %p248 = por %p246, %p247
      %s250 = sadd.s32 %s249, 1
      %p253 = scmp.eq.s32.totalorder %s17, 2
      %p254 = scmp.ne.s32.totalorder %s249, %s251
      %p255 = scmp.eq.s32.totalorder %s17, 0
      %p256 = por %p254, %p255
      %p257 = scmp.ne.s32.totalorder %s249, %s251
      %p258 = scmp.eq.s32.totalorder %s22, 2
      %p259 = por %p257, %p258
      %p260 = scmp.ne.s32.totalorder %s251, %s252
      %p261 = scmp.eq.s32.totalorder %s22, 0
      %p262 = por %p260, %p261
      %p263 = scmp.ne.s32.totalorder %s251, %s252
      %p264 = scmp.eq.s32.totalorder %s23, 2
      %p265 = por %p263, %p264
      %p267 = scmp.ne.s32.totalorder %s252, %s266
      %p268 = scmp.eq.s32.totalorder %s23, 0
      %p269 = por %p267, %p268
      %p270 = scmp.le.s32.totalorder 1, %s17
      %p271 = scmp.lt.s32.totalorder %s17, 4
      %p272 = pnand %p270, %p271
      %p273 = pneg %p272
      // Predicated region
      $region9: #{tpu_custom_call.1} parent=5 // pred_check
        _
      $region10: #{tpu_custom_call.1} parent=5 // pred_check_branch
        %275 = sbr.rel (%p272) target = $region12
      $region11: #{tpu_custom_call.1} parent=5 // pred_region
        %s276 = ssub.s32 %s17, 1
        // Predicated region
        $region13: #{tpu_custom_call.1} parent=11 // pred_check
          %p277 = pneg %p57
        $region14: #{tpu_custom_call.1} parent=11 // pred_check_branch
          %279 = sbr.rel (%p277) target = $region16
        $region15: #{tpu_custom_call.1} parent=11 // pred_region
          %s281 = ssub.s32 2048, 2048
          %282 = vsyncadd [#allocation8], %s281
          %s283 = sshll.u32 [#allocation7], 4
          %s284 = int_to_ptr.vmem [resolvable:$true] %s283
          %289 = dma.hbm_to_vmem [thread:$0]  %s0, 2048, %s284, [#allocation8], 128, 128, 8
        $region16: #{tpu_custom_call.1} parent=11 // pred_fallthru
          _
        // Predicated region
        $region17: #{tpu_custom_call.1} parent=11 // pred_check
          %p290 = pneg %p85
        $region18: #{tpu_custom_call.1} parent=11 // pred_check_branch
          %292 = sbr.rel (%p290) target = $region20
        $region19: #{tpu_custom_call.1} parent=11 // pred_region
          %s293 = smul.u32 16, %s28
          %s295 = ssub.s32 1024, 1024
          %296 = vsyncadd [#allocation11], %s295
          %s297 = sadd.s32 %s29, %s293
          %s298 = smul.addr %s297, 64
          %s299 = scalar_lea.hbm %s1, %s298
          %s300 = sshll.u32 [#allocation10], 4
          %s301 = int_to_ptr.vmem [resolvable:$true] %s300
          %306 = dma.hbm_to_vmem [thread:$0]  %s299, 1024, %s301, [#allocation11], 64, 64, 4
        $region20: #{tpu_custom_call.1} parent=11 // pred_fallthru
          _
      $region12: #{tpu_custom_call.1} parent=5 // pred_fallthru
        _
      %p307 = scmp.lt.s32.totalorder %s17, 3
      // Predicated region
      $region21: #{tpu_custom_call.1} parent=5 // pred_check
        %p308 = pneg %p307
      $region22: #{tpu_custom_call.1} parent=5 // pred_check_branch
        %310 = sbr.rel (%p308) target = $region24
      $region23: #{tpu_custom_call.1} parent=5 // pred_region
        // Predicated region
        $region25: #{tpu_custom_call.1} parent=23 // pred_check
          %p311 = pneg %p105
        $region26: #{tpu_custom_call.1} parent=23 // pred_check_branch
          %313 = sbr.rel (%p311) target = $region28
        $region27: #{tpu_custom_call.1} parent=23 // pred_region
          %s314 = sand.u32 %s17, 1
          %s315 = scalar_lea.sflag [#allocation8], %s314
          %s316 = sand.u32 %s95, 1
          %s317 = smul.addr %s316, 128
          %s318 = scalar_lea.vmem [#allocation12], %s317
          %s320 = ssub.s32 2048, 2048
          %321 = vsyncadd %s315, %s320
          %s322 = smul.addr %s24, 16
          %s323 = smul.addr %s322, 128
          %s324 = scalar_lea.hbm %s2, %s323
          %s325 = sshll.u32 %s318, 4
          %s326 = int_to_ptr.vmem [resolvable:$true] %s325
          %331 = dma.hbm_to_vmem [thread:$0]  %s324, 2048, %s326, %s315, 128, 128, 8
        $region28: #{tpu_custom_call.1} parent=23 // pred_fallthru
          _
        // Predicated region
        $region29: #{tpu_custom_call.1} parent=23 // pred_check
          %p332 = pneg %p131
        $region30: #{tpu_custom_call.1} parent=23 // pred_check_branch
          %334 = sbr.rel (%p332) target = $region32
        $region31: #{tpu_custom_call.1} parent=23 // pred_region
          %p335 = scmp.lt.s32.totalorder %s24, 2
          %s336 = scalar_select %p335, %s24, 2
          %s337 = scalar_lea.vmem %s3, %s336
        $region32: #{tpu_custom_call.1} parent=23 // pred_fallthru
          _
        // Predicated region
        $region33: #{tpu_custom_call.1} parent=23 // pred_check
          %p338 = pneg %p157
        $region34: #{tpu_custom_call.1} parent=23 // pred_check_branch
          %340 = sbr.rel (%p338) target = $region36
        $region35: #{tpu_custom_call.1} parent=23 // pred_region
          %s341 = sand.u32 %s17, 1
          %s342 = scalar_lea.sflag [#allocation8], %s341
          %s343 = sand.u32 %s147, 1
          %s344 = smul.addr %s343, 128
          %s345 = scalar_lea.vmem [#allocation13], %s344
          %s347 = ssub.s32 2048, 2048
          %348 = vsyncadd %s342, %s347
          %s349 = smul.addr %s24, 16
          %s350 = smul.addr %s349, 128
          %s351 = scalar_lea.hbm %s4, %s350
          %s352 = sshll.u32 %s345, 4
          %s353 = int_to_ptr.vmem [resolvable:$true] %s352
          %358 = dma.hbm_to_vmem [thread:$0]  %s351, 2048, %s353, %s342, 128, 128, 8
        $region36: #{tpu_custom_call.1} parent=23 // pred_fallthru
          _
        // Predicated region
        $region37: #{tpu_custom_call.1} parent=23 // pred_check
          %p359 = pneg %p183
        $region38: #{tpu_custom_call.1} parent=23 // pred_check_branch
          %361 = sbr.rel (%p359) target = $region40
        $region39: #{tpu_custom_call.1} parent=23 // pred_region
          %p362 = scmp.lt.s32.totalorder %s24, 2
          %s363 = scalar_select %p362, %s24, 2
          %s364 = scalar_lea.vmem %s5, %s363
        $region40: #{tpu_custom_call.1} parent=23 // pred_fallthru
          _
        // Predicated region
        $region41: #{tpu_custom_call.1} parent=23 // pred_check
          %p365 = pneg %p209
        $region42: #{tpu_custom_call.1} parent=23 // pred_check_branch
          %367 = sbr.rel (%p365) target = $region44
        $region43: #{tpu_custom_call.1} parent=23 // pred_region
          %p368 = scmp.lt.s32.totalorder %s24, 2
          %s369 = scalar_select %p368, %s24, 2
          %s370 = scalar_lea.vmem %s6, %s369
        $region44: #{tpu_custom_call.1} parent=23 // pred_fallthru
          _
        // Predicated region
        $region45: #{tpu_custom_call.1} parent=23 // pred_check
          %p371 = pneg %p235
        $region46: #{tpu_custom_call.1} parent=23 // pred_check_branch
          %373 = sbr.rel (%p371) target = $region48
        $region47: #{tpu_custom_call.1} parent=23 // pred_region
          %p374 = scmp.lt.s32.totalorder %s24, 2
          %s375 = scalar_select %p374, %s24, 2
          %s376 = scalar_lea.vmem %s7, %s375
        $region48: #{tpu_custom_call.1} parent=23 // pred_fallthru
          _
      $region24: #{tpu_custom_call.1} parent=5 // pred_fallthru
        _
      %p377 = scmp.le.s32.totalorder 1, %s17
      %p378 = scmp.lt.s32.totalorder %s17, 4
      %p379 = pnand %p377, %p378
      %p380 = pneg %p379
      // Predicated region
      $region49: #{tpu_custom_call.1} parent=5 // pred_check
        _
      $region50: #{tpu_custom_call.1} parent=5 // pred_check_branch
        %382 = sbr.rel (%p379) target = $region52
      $region51: #{tpu_custom_call.1} parent=5 // pred_region
        %s383 = ssub.s32 %s17, 1
        // Predicated region
        $region53: #{tpu_custom_call.1} parent=51 // pred_check
          %p384 = pneg %p57
        $region54: #{tpu_custom_call.1} parent=51 // pred_check_branch
          %386 = sbr.rel (%p384) target = $region56
        $region55: #{tpu_custom_call.1} parent=51 // pred_region
          %387 = dma.done [#allocation8], 2048
        $region56: #{tpu_custom_call.1} parent=51 // pred_fallthru
          _
        // Predicated region
        $region57: #{tpu_custom_call.1} parent=51 // pred_check
          %p388 = pneg %p85
        $region58: #{tpu_custom_call.1} parent=51 // pred_check_branch
          %390 = sbr.rel (%p388) target = $region60
        $region59: #{tpu_custom_call.1} parent=51 // pred_region
          %391 = dma.done [#allocation11], 1024
        $region60: #{tpu_custom_call.1} parent=51 // pred_fallthru
          _
        %s392 = sand.u32 %s22, 1
        %s393 = scalar_lea.sflag [#allocation8], %s392
        %s394 = sand.u32 %s98, 1
        %s395 = smul.addr %s394, 128
        %s396 = scalar_lea.vmem [#allocation12], %s395
        // Predicated region
        $region61: #{tpu_custom_call.1} parent=51 // pred_check
          %p397 = pneg %p111
        $region62: #{tpu_custom_call.1} parent=51 // pred_check_branch
          %399 = sbr.rel (%p397) target = $region64
        $region63: #{tpu_custom_call.1} parent=51 // pred_region
          %400 = dma.done %s393, 2048
        $region64: #{tpu_custom_call.1} parent=51 // pred_fallthru
          _
        %s401 = sand.u32 %s22, 1
        %s402 = scalar_lea.sflag [#allocation8], %s401
        %s403 = sand.u32 %s150, 1
        %s404 = smul.addr %s403, 128
        %s405 = scalar_lea.vmem [#allocation13], %s404
        // Predicated region
        $region65: #{tpu_custom_call.1} parent=51 // pred_check
          %p406 = pneg %p163
        $region66: #{tpu_custom_call.1} parent=51 // pred_check_branch
          %408 = sbr.rel (%p406) target = $region68
        $region67: #{tpu_custom_call.1} parent=51 // pred_region
          %409 = dma.done %s402, 2048
        $region68: #{tpu_custom_call.1} parent=51 // pred_fallthru
          _
        %p410 = pneg %p57
        %p411 = pneg %p54
        %p412 = pneg %p85
        %p413 = pneg %p82
        %s414 = sand.u32 %s22, 1
        %s415 = scalar_lea.sflag [#allocation8], %s414
        %s416 = sand.u32 %s98, 1
        %s417 = smul.addr %s416, 128
        %s418 = scalar_lea.vmem [#allocation12], %s417
        %p419 = pneg %p111
        %p420 = pneg %p108
        %p421 = scmp.lt.s32.totalorder %s27, 2
        %s422 = scalar_select %p421, %s27, 2
        %s423 = scalar_lea.vmem %s3, %s422
        %p424 = pneg %p137
        %p425 = pneg %p134
        %s426 = sand.u32 %s22, 1
        %s427 = scalar_lea.sflag [#allocation8], %s426
        %s428 = sand.u32 %s150, 1
        %s429 = smul.addr %s428, 128
        %s430 = scalar_lea.vmem [#allocation13], %s429
        %p431 = pneg %p163
        %p432 = pneg %p160
        %p433 = scmp.lt.s32.totalorder %s27, 2
        %s434 = scalar_select %p433, %s27, 2
        %s435 = scalar_lea.vmem %s5, %s434
        %p436 = pneg %p189
        %p437 = pneg %p186
        %p438 = scmp.lt.s32.totalorder %s27, 2
        %s439 = scalar_select %p438, %s27, 2
        %s440 = scalar_lea.vmem %s6, %s439
        %p441 = pneg %p215
        %p442 = pneg %p212
        %p443 = scmp.lt.s32.totalorder %s27, 2
        %s444 = scalar_select %p443, %s27, 2
        %s445 = scalar_lea.vmem %s7, %s444
        %p446 = pneg %p241
        %p447 = pneg %p238
        %p448 = pneg %p262
        %p449 = pneg %p259
        %s450 = smul.u32 16, %s28
        %p451 = scmp.lt.s32.totalorder %s27, 2
        %s452 = scalar_select %p451, %s27, 2
        %s453 = scalar_lea.vmem %s3, %s452
        %p454 = scmp.lt.s32.totalorder %s27, 2
        %s455 = scalar_select %p454, %s27, 2
        %s456 = scalar_lea.vmem %s5, %s455
        %p457 = scmp.lt.s32.totalorder %s27, 2
        %s458 = scalar_select %p457, %s27, 2
        %s459 = scalar_lea.vmem %s6, %s458
        %p460 = scmp.lt.s32.totalorder %s27, 2
        %s461 = scalar_select %p460, %s27, 2
        %s462 = scalar_lea.vmem %s7, %s461
        %s463 = smul.u32 %s28, 128
        %s464 = smul.u32 %s29, 128
        %p465 = scmp.eq.s32.totalorder %s27, 0
        %p466 = scmp.eq.s32.totalorder %s28, 0
        %p467 = pnand %p465, %p466
        %p468 = pneg %p467
        %p469 = scmp.eq.s32.totalorder %s29, 0
        %p470 = pnand %p468, %p469
        %p471 = pneg %p470
        // Predicated region
        $region69: #{tpu_custom_call.1} parent=51 // pred_check
          _
        $region70: #{tpu_custom_call.1} parent=51 // pred_check_branch
          %473 = sbr.rel (%p470) target = $region72
        $region71: #{tpu_custom_call.1} parent=51 // pred_region
          %v474 = vld [vmem:[#allocation7] sm:$0xff]
          %v475 = vld [vmem:[#allocation7 + $0x8] sm:$0xff]
          %v476 = vld [vmem:[#allocation7 + $0x10] sm:$0xff]
          %v477 = vld [vmem:[#allocation7 + $0x18] sm:$0xff]
          %v478 = vld [vmem:[#allocation7 + $0x20] sm:$0xff]
          %v479 = vld [vmem:[#allocation7 + $0x28] sm:$0xff]
          %v480 = vld [vmem:[#allocation7 + $0x30] sm:$0xff]
          %v481 = vld [vmem:[#allocation7 + $0x38] sm:$0xff]
          %v482 = vld [vmem:[#allocation7 + $0x40] sm:$0xff]
          %v483 = vld [vmem:[#allocation7 + $0x48] sm:$0xff]
          %v484 = vld [vmem:[#allocation7 + $0x50] sm:$0xff]
          %v485 = vld [vmem:[#allocation7 + $0x58] sm:$0xff]
          %v486 = vld [vmem:[#allocation7 + $0x60] sm:$0xff]
          %v487 = vld [vmem:[#allocation7 + $0x68] sm:$0xff]
          %v488 = vld [vmem:[#allocation7 + $0x70] sm:$0xff]
          %v489 = vld [vmem:[#allocation7 + $0x78] sm:$0xff]
          %490 = vst [vmem:[#allocation3] sm:$0xff] %v474
          %491 = vst [vmem:[#allocation3 + $0x8] sm:$0xff] %v475
          %492 = vst [vmem:[#allocation3 + $0x10] sm:$0xff] %v476
          %493 = vst [vmem:[#allocation3 + $0x18] sm:$0xff] %v477
          %494 = vst [vmem:[#allocation3 + $0x20] sm:$0xff] %v478
          %495 = vst [vmem:[#allocation3 + $0x28] sm:$0xff] %v479
          %496 = vst [vmem:[#allocation3 + $0x30] sm:$0xff] %v480
          %497 = vst [vmem:[#allocation3 + $0x38] sm:$0xff] %v481
          %498 = vst [vmem:[#allocation3 + $0x40] sm:$0xff] %v482
          %499 = vst [vmem:[#allocation3 + $0x48] sm:$0xff] %v483
          %500 = vst [vmem:[#allocation3 + $0x50] sm:$0xff] %v484
          %501 = vst [vmem:[#allocation3 + $0x58] sm:$0xff] %v485
          %502 = vst [vmem:[#allocation3 + $0x60] sm:$0xff] %v486
          %503 = vst [vmem:[#allocation3 + $0x68] sm:$0xff] %v487
          %504 = vst [vmem:[#allocation3 + $0x70] sm:$0xff] %v488
          %505 = vst [vmem:[#allocation3 + $0x78] sm:$0xff] %v489
        $region72: #{tpu_custom_call.1} parent=51 // pred_fallthru
          _
        %p506 = pnand %p466, %p469
        %p507 = pneg %p506
        // Predicated region
        $region73: #{tpu_custom_call.1} parent=51 // pred_check
          _
        $region74: #{tpu_custom_call.1} parent=51 // pred_check_branch
          %509 = sbr.rel (%p506) target = $region76
        $region75: #{tpu_custom_call.1} parent=51 // pred_region
          %510 = vst [vmem:[#allocation5] sm:$0x1] 0.0
          %511 = vst [vmem:[#allocation6] sm:$0x1] 0.0
        $region76: #{tpu_custom_call.1} parent=51 // pred_fallthru
          _
        // Predicated region
        $region77: #{tpu_custom_call.1} parent=51 // pred_check
          %p512 = pneg %p469
        $region78: #{tpu_custom_call.1} parent=51 // pred_check_branch
          %514 = sbr.rel (%p512) target = $region80
        $region79: #{tpu_custom_call.1} parent=51 // pred_region
          %s515 = scalar_lea.vmem [#allocation3], %s463
          %v516 = vld [vmem:[%s515] sm:$0xff]
          %v517 = vld [vmem:[%s515 + $0x8] sm:$0xff]
          %v518 = vld [vmem:[%s515 + $0x10] sm:$0xff]
          %v519 = vld [vmem:[%s515 + $0x18] sm:$0xff]
          %v520 = vld [vmem:[%s515 + $0x20] sm:$0xff]
          %v521 = vld [vmem:[%s515 + $0x28] sm:$0xff]
          %v522 = vld [vmem:[%s515 + $0x30] sm:$0xff]
          %v523 = vld [vmem:[%s515 + $0x38] sm:$0xff]
          %v524 = vld [vmem:[%s515 + $0x40] sm:$0xff]
          %v525 = vld [vmem:[%s515 + $0x48] sm:$0xff]
          %v526 = vld [vmem:[%s515 + $0x50] sm:$0xff]
          %v527 = vld [vmem:[%s515 + $0x58] sm:$0xff]
          %v528 = vld [vmem:[%s515 + $0x60] sm:$0xff]
          %v529 = vld [vmem:[%s515 + $0x68] sm:$0xff]
          %v530 = vld [vmem:[%s515 + $0x70] sm:$0xff]
          %v531 = vld [vmem:[%s515 + $0x78] sm:$0xff]
          %532 = vst [vmem:[#allocation2] sm:$0xff] %v516
          %533 = vst [vmem:[#allocation2 + $0x8] sm:$0xff] %v517
          %534 = vst [vmem:[#allocation2 + $0x10] sm:$0xff] %v518
          %535 = vst [vmem:[#allocation2 + $0x18] sm:$0xff] %v519
          %536 = vst [vmem:[#allocation2 + $0x20] sm:$0xff] %v520
          %537 = vst [vmem:[#allocation2 + $0x28] sm:$0xff] %v521
          %538 = vst [vmem:[#allocation2 + $0x30] sm:$0xff] %v522
          %539 = vst [vmem:[#allocation2 + $0x38] sm:$0xff] %v523
          %540 = vst [vmem:[#allocation2 + $0x40] sm:$0xff] %v524
          %541 = vst [vmem:[#allocation2 + $0x48] sm:$0xff] %v525
          %542 = vst [vmem:[#allocation2 + $0x50] sm:$0xff] %v526
          %543 = vst [vmem:[#allocation2 + $0x58] sm:$0xff] %v527
          %544 = vst [vmem:[#allocation2 + $0x60] sm:$0xff] %v528
          %545 = vst [vmem:[#allocation2 + $0x68] sm:$0xff] %v529
          %546 = vst [vmem:[#allocation2 + $0x70] sm:$0xff] %v530
          %547 = vst [vmem:[#allocation2 + $0x78] sm:$0xff] %v531
        $region80: #{tpu_custom_call.1} parent=51 // pred_fallthru
          _
        %v548 = vld [vmem:[#allocation10] sm:$0xf]
        %v549 = vld [vmem:[#allocation10 + $0x4] sm:$0xf]
        %v550 = vld [vmem:[#allocation10 + $0x8] sm:$0xf]
        %v551 = vld [vmem:[#allocation10 + $0xc] sm:$0xf]
        %v552 = vld [vmem:[#allocation10 + $0x10] sm:$0xf]
        %v553 = vld [vmem:[#allocation10 + $0x14] sm:$0xf]
        %v554 = vld [vmem:[#allocation10 + $0x18] sm:$0xf]
        %v555 = vld [vmem:[#allocation10 + $0x1c] sm:$0xf]
        %v556 = vld [vmem:[#allocation10 + $0x20] sm:$0xf]
        %v557 = vld [vmem:[#allocation10 + $0x24] sm:$0xf]
        %v558 = vld [vmem:[#allocation10 + $0x28] sm:$0xf]
        %v559 = vld [vmem:[#allocation10 + $0x2c] sm:$0xf]
        %v560 = vld [vmem:[#allocation10 + $0x30] sm:$0xf]
        %v561 = vld [vmem:[#allocation10 + $0x34] sm:$0xf]
        %v562 = vld [vmem:[#allocation10 + $0x38] sm:$0xf]
        %v563 = vld [vmem:[#allocation10 + $0x3c] sm:$0xf]
        %v564 = vunpack.c.l.bf16 %v548
        %v565 = vunpack.c.l.bf16 %v549
        %v566 = vunpack.c.l.bf16 %v550
        %v567 = vunpack.c.l.bf16 %v551
        %v568 = vunpack.c.l.bf16 %v552
        %v569 = vunpack.c.l.bf16 %v553
        %v570 = vunpack.c.l.bf16 %v554
        %v571 = vunpack.c.l.bf16 %v555
        %v572 = vunpack.c.l.bf16 %v556
        %v573 = vunpack.c.l.bf16 %v557
        %v574 = vunpack.c.l.bf16 %v558
        %v575 = vunpack.c.l.bf16 %v559
        %v576 = vunpack.c.l.bf16 %v560
        %v577 = vunpack.c.l.bf16 %v561
        %v578 = vunpack.c.l.bf16 %v562
        %v579 = vunpack.c.l.bf16 %v563
        %v580 = vld [vmem:[#allocation2] sm:$0xff]
        %v581 = vld [vmem:[#allocation2 + $0x8] sm:$0xff]
        %v582 = vld [vmem:[#allocation2 + $0x10] sm:$0xff]
        %v583 = vld [vmem:[#allocation2 + $0x18] sm:$0xff]
        %v584 = vld [vmem:[#allocation2 + $0x20] sm:$0xff]
        %v585 = vld [vmem:[#allocation2 + $0x28] sm:$0xff]
        %v586 = vld [vmem:[#allocation2 + $0x30] sm:$0xff]
        %v587 = vld [vmem:[#allocation2 + $0x38] sm:$0xff]
        %v588 = vld [vmem:[#allocation2 + $0x40] sm:$0xff]
        %v589 = vld [vmem:[#allocation2 + $0x48] sm:$0xff]
        %v590 = vld [vmem:[#allocation2 + $0x50] sm:$0xff]
        %v591 = vld [vmem:[#allocation2 + $0x58] sm:$0xff]
        %v592 = vld [vmem:[#allocation2 + $0x60] sm:$0xff]
        %v593 = vld [vmem:[#allocation2 + $0x68] sm:$0xff]
        %v594 = vld [vmem:[#allocation2 + $0x70] sm:$0xff]
        %v595 = vld [vmem:[#allocation2 + $0x78] sm:$0xff]
        %s596 = scalar_lea.vmem [#allocation3], %s464
        %v597 = vld [vmem:[%s596] sm:$0xff]
        %v598 = vld [vmem:[%s596 + $0x8] sm:$0xff]
        %v599 = vld [vmem:[%s596 + $0x10] sm:$0xff]
        %v600 = vld [vmem:[%s596 + $0x18] sm:$0xff]
        %v601 = vld [vmem:[%s596 + $0x20] sm:$0xff]
        %v602 = vld [vmem:[%s596 + $0x28] sm:$0xff]
        %v603 = vld [vmem:[%s596 + $0x30] sm:$0xff]
        %v604 = vld [vmem:[%s596 + $0x38] sm:$0xff]
        %v605 = vld [vmem:[%s596 + $0x40] sm:$0xff]
        %v606 = vld [vmem:[%s596 + $0x48] sm:$0xff]
        %v607 = vld [vmem:[%s596 + $0x50] sm:$0xff]
        %v608 = vld [vmem:[%s596 + $0x58] sm:$0xff]
        %v609 = vld [vmem:[%s596 + $0x60] sm:$0xff]
        %v610 = vld [vmem:[%s596 + $0x68] sm:$0xff]
        %v611 = vld [vmem:[%s596 + $0x70] sm:$0xff]
        %v612 = vld [vmem:[%s596 + $0x78] sm:$0xff]
        %613 = vmatprep.subr.mxu0 0.0
        %614 = vmatpush1.msra.mxu0 %v597
        %615 = vmatprep.subr.mxu0 0.0
        %616 = vmatpush1.msra.mxu0 %v598
        %617 = vmatprep.subr.mxu0 0.0
        %618 = vmatpush1.msra.mxu0 %v599
        %619 = vmatprep.subr.mxu0 0.0
        %620 = vmatpush1.msra.mxu0 %v600
        %621 = vmatprep.subr.mxu0 0.0
        %622 = vmatpush1.msra.mxu0 %v601
        %623 = vmatprep.subr.mxu0 0.0
        %624 = vmatpush1.msra.mxu0 %v602
        %625 = vmatprep.subr.mxu0 0.0
        %626 = vmatpush1.msra.mxu0 %v603
        %627 = vmatprep.subr.mxu0 0.0
        %628 = vmatpush1.msra.mxu0 %v604
        %629 = vmatprep.subr.mxu0 0.0
        %630 = vmatpush1.msra.mxu0 %v605
        %631 = vmatprep.subr.mxu0 0.0
        %632 = vmatpush1.msra.mxu0 %v606
        %633 = vmatprep.subr.mxu0 0.0
        %634 = vmatpush1.msra.mxu0 %v607
        %635 = vmatprep.subr.mxu0 0.0
        %636 = vmatpush1.msra.mxu0 %v608
        %637 = vmatprep.subr.mxu0 0.0
        %638 = vmatpush1.msra.mxu0 %v609
        %639 = vmatprep.subr.mxu0 0.0
        %640 = vmatpush1.msra.mxu0 %v610
        %641 = vmatprep.subr.mxu0 0.0
        %642 = vmatpush1.msra.mxu0 %v611
        %643 = vmatprep.subr.mxu0 0.0
        %644 = vmatpush1.msra.mxu0 %v612
        %645 = vmatprep.subr.mxu0 0.0
        %646 = vmatpush1.msra.mxu0 0.0
        %647 = vmatprep.subr.mxu0 0.0
        %648 = vmatpush1.msra.mxu0 0.0
        %649 = vmatprep.subr.mxu0 0.0
        %650 = vmatpush1.msra.mxu0 0.0
        %651 = vmatprep.subr.mxu0 0.0
        %652 = vmatpush1.msra.mxu0 0.0
        %653 = vmatprep.subr.mxu0 0.0
        %654 = vmatpush1.msra.mxu0 0.0
        %655 = vmatprep.subr.mxu0 0.0
        %656 = vmatpush1.msra.mxu0 0.0
        %657 = vmatprep.subr.mxu0 0.0
        %658 = vmatpush1.msra.mxu0 0.0
        %659 = vmatprep.subr.mxu0 0.0
        %660 = vmatpush1.msra.mxu0 0.0
        %661 = vmatprep.subr.mxu0 0.0
        %662 = vmatpush1.msra.mxu0 0.0
        %663 = vmatprep.subr.mxu0 0.0
        %664 = vmatpush1.msra.mxu0 0.0
        %665 = vmatprep.subr.mxu0 0.0
        %666 = vmatpush1.msra.mxu0 0.0
        %667 = vmatprep.subr.mxu0 0.0
        %668 = vmatpush1.msra.mxu0 0.0
        %669 = vmatprep.subr.mxu0 0.0
        %670 = vmatpush1.msra.mxu0 0.0
        %671 = vmatprep.subr.mxu0 0.0
        %672 = vmatpush1.msra.mxu0 0.0
        %673 = vmatprep.subr.mxu0 0.0
        %674 = vmatpush1.msra.mxu0 0.0
        %675 = vmatprep.subr.mxu0 0.0
        %676 = vmatpush1.msra.mxu0 0.0
        %677 = vmatprep.mubr.f32.mxu0 0.0
        %678 = vmatmul.mubr.f32.gmra.mrb[0].mxu0 %v564
        %v679 = vpop.f32.mrb[0].mxu0
        %v680 = vadd.f32 0.0, %v679
        %v681 = vpop.f32.mrb[0].mxu0
        %682 = vmatprep.mubr.f32.mxu0 0.0
        %683 = vmatmul.mubr.f32.gmra.mrb[0].mxu0 %v565
        %v684 = vpop.f32.mrb[0].mxu0
        %v685 = vadd.f32 0.0, %v684
        %v686 = vpop.f32.mrb[0].mxu0
        %687 = vmatprep.mubr.f32.mxu0 0.0
        %688 = vmatmul.mubr.f32.gmra.mrb[0].mxu0 %v566
        %v689 = vpop.f32.mrb[0].mxu0
        %v690 = vadd.f32 0.0, %v689
        %v691 = vpop.f32.mrb[0].mxu0
        %692 = vmatprep.mubr.f32.mxu0 0.0
        %693 = vmatmul.mubr.f32.gmra.mrb[0].mxu0 %v567
        %v694 = vpop.f32.mrb[0].mxu0
        %v695 = vadd.f32 0.0, %v694
        %v696 = vpop.f32.mrb[0].mxu0
        %697 = vmatprep.mubr.f32.mxu0 0.0
        %698 = vmatmul.mubr.f32.gmra.mrb[0].mxu0 %v568
        %v699 = vpop.f32.mrb[0].mxu0
        %v700 = vadd.f32 0.0, %v699
        %v701 = vpop.f32.mrb[0].mxu0
        %702 = vmatprep.mubr.f32.mxu0 0.0
        %703 = vmatmul.mubr.f32.gmra.mrb[0].mxu0 %v569
        %v704 = vpop.f32.mrb[0].mxu0
        %v705 = vadd.f32 0.0, %v704
        %v706 = vpop.f32.mrb[0].mxu0
        %707 = vmatprep.mubr.f32.mxu0 0.0
        %708 = vmatmul.mubr.f32.gmra.mrb[0].mxu0 %v570
        %v709 = vpop.f32.mrb[0].mxu0
        %v710 = vadd.f32 0.0, %v709
        %v711 = vpop.f32.mrb[0].mxu0
        %712 = vmatprep.mubr.f32.mxu0 0.0
        %713 = vmatmul.mubr.f32.gmra.mrb[0].mxu0 %v571
        %v714 = vpop.f32.mrb[0].mxu0
        %v715 = vadd.f32 0.0, %v714
        %v716 = vpop.f32.mrb[0].mxu0
        %717 = vmatprep.mubr.f32.mxu0 0.0
        %718 = vmatmul.mubr.f32.gmra.mrb[0].mxu0 %v572
        %v719 = vpop.f32.mrb[0].mxu0
        %v720 = vadd.f32 0.0, %v719
        %v721 = vpop.f32.mrb[0].mxu0
        %722 = vmatprep.mubr.f32.mxu0 0.0
        %723 = vmatmul.mubr.f32.gmra.mrb[0].mxu0 %v573
        %v724 = vpop.f32.mrb[0].mxu0
        %v725 = vadd.f32 0.0, %v724
        %v726 = vpop.f32.mrb[0].mxu0
        %727 = vmatprep.mubr.f32.mxu0 0.0
        %728 = vmatmul.mubr.f32.gmra.mrb[0].mxu0 %v574
        %v729 = vpop.f32.mrb[0].mxu0
        %v730 = vadd.f32 0.0, %v729
        %v731 = vpop.f32.mrb[0].mxu0
        %732 = vmatprep.mubr.f32.mxu0 0.0
        %733 = vmatmul.mubr.f32.gmra.mrb[0].mxu0 %v575
        %v734 = vpop.f32.mrb[0].mxu0
        %v735 = vadd.f32 0.0, %v734
        %v736 = vpop.f32.mrb[0].mxu0
        %737 = vmatprep.mubr.f32.mxu0 0.0
        %738 = vmatmul.mubr.f32.gmra.mrb[0].mxu0 %v576
        %v739 = vpop.f32.mrb[0].mxu0
        %v740 = vadd.f32 0.0, %v739
        %v741 = vpop.f32.mrb[0].mxu0
        %742 = vmatprep.mubr.f32.mxu0 0.0
        %743 = vmatmul.mubr.f32.gmra.mrb[0].mxu0 %v577
        %v744 = vpop.f32.mrb[0].mxu0
        %v745 = vadd.f32 0.0, %v744
        %v746 = vpop.f32.mrb[0].mxu0
        %747 = vmatprep.mubr.f32.mxu0 0.0
        %748 = vmatmul.mubr.f32.gmra.mrb[0].mxu0 %v578
        %v749 = vpop.f32.mrb[0].mxu0
        %v750 = vadd.f32 0.0, %v749
        %v751 = vpop.f32.mrb[0].mxu0
        %752 = vmatprep.mubr.f32.mxu0 0.0
        %753 = vmatmul.mubr.f32.gmra.mrb[0].mxu0 %v579
        %v754 = vpop.f32.mrb[0].mxu0
        %v755 = vadd.f32 0.0, %v754
        %v756 = vpop.f32.mrb[0].mxu0
        %757 = vdwg.mxu0
        %v758 = vadd.f32 %v580, %v680
        %v759 = vadd.f32 %v581, %v685
        %v760 = vadd.f32 %v582, %v690
        %v761 = vadd.f32 %v583, %v695
        %v762 = vadd.f32 %v584, %v700
        %v763 = vadd.f32 %v585, %v705
        %v764 = vadd.f32 %v586, %v710
        %v765 = vadd.f32 %v587, %v715
        %v766 = vadd.f32 %v588, %v720
        %v767 = vadd.f32 %v589, %v725
        %v768 = vadd.f32 %v590, %v730
        %v769 = vadd.f32 %v591, %v735
        %v770 = vadd.f32 %v592, %v740
        %v771 = vadd.f32 %v593, %v745
        %v772 = vadd.f32 %v594, %v750
        %v773 = vadd.f32 %v595, %v755
        %774 = vst [vmem:[#allocation2] sm:$0xff] %v758
        %775 = vst [vmem:[#allocation2 + $0x8] sm:$0xff] %v759
        %776 = vst [vmem:[#allocation2 + $0x10] sm:$0xff] %v760
        %777 = vst [vmem:[#allocation2 + $0x18] sm:$0xff] %v761
        %778 = vst [vmem:[#allocation2 + $0x20] sm:$0xff] %v762
        %779 = vst [vmem:[#allocation2 + $0x28] sm:$0xff] %v763
        %780 = vst [vmem:[#allocation2 + $0x30] sm:$0xff] %v764
        %781 = vst [vmem:[#allocation2 + $0x38] sm:$0xff] %v765
        %782 = vst [vmem:[#allocation2 + $0x40] sm:$0xff] %v766
        %783 = vst [vmem:[#allocation2 + $0x48] sm:$0xff] %v767
        %784 = vst [vmem:[#allocation2 + $0x50] sm:$0xff] %v768
        %785 = vst [vmem:[#allocation2 + $0x58] sm:$0xff] %v769
        %786 = vst [vmem:[#allocation2 + $0x60] sm:$0xff] %v770
        %787 = vst [vmem:[#allocation2 + $0x68] sm:$0xff] %v771
        %788 = vst [vmem:[#allocation2 + $0x70] sm:$0xff] %v772
        %789 = vst [vmem:[#allocation2 + $0x78] sm:$0xff] %v773
        // Predicated region
        $region81: #{tpu_custom_call.1} parent=51 // pred_check
          %p790 = pneg %p469
        $region82: #{tpu_custom_call.1} parent=51 // pred_check_branch
          %792 = sbr.rel (%p790) target = $region84
        $region83: #{tpu_custom_call.1} parent=51 // pred_region
          %v793 = vld [vmem:[#allocation2] sm:$0xff]
          %v794 = vld [vmem:[#allocation2 + $0x8] sm:$0xff]
          %v795 = vld [vmem:[#allocation2 + $0x10] sm:$0xff]
          %v796 = vld [vmem:[#allocation2 + $0x18] sm:$0xff]
          %v797 = vld [vmem:[#allocation2 + $0x20] sm:$0xff]
          %v798 = vld [vmem:[#allocation2 + $0x28] sm:$0xff]
          %v799 = vld [vmem:[#allocation2 + $0x30] sm:$0xff]
          %v800 = vld [vmem:[#allocation2 + $0x38] sm:$0xff]
          %v801 = vld [vmem:[#allocation2 + $0x40] sm:$0xff]
          %v802 = vld [vmem:[#allocation2 + $0x48] sm:$0xff]
          %v803 = vld [vmem:[#allocation2 + $0x50] sm:$0xff]
          %v804 = vld [vmem:[#allocation2 + $0x58] sm:$0xff]
          %v805 = vld [vmem:[#allocation2 + $0x60] sm:$0xff]
          %v806 = vld [vmem:[#allocation2 + $0x68] sm:$0xff]
          %v807 = vld [vmem:[#allocation2 + $0x70] sm:$0xff]
          %v808 = vld [vmem:[#allocation2 + $0x78] sm:$0xff]
          %v809 = vld [vmem:[%s396] sm:$0xff]
          %v810 = vld [vmem:[%s396 + $0x8] sm:$0xff]
          %v811 = vld [vmem:[%s396 + $0x10] sm:$0xff]
          %v812 = vld [vmem:[%s396 + $0x18] sm:$0xff]
          %v813 = vld [vmem:[%s396 + $0x20] sm:$0xff]
          %v814 = vld [vmem:[%s396 + $0x28] sm:$0xff]
          %v815 = vld [vmem:[%s396 + $0x30] sm:$0xff]
          %v816 = vld [vmem:[%s396 + $0x38] sm:$0xff]
          %v817 = vld [vmem:[%s396 + $0x40] sm:$0xff]
          %v818 = vld [vmem:[%s396 + $0x48] sm:$0xff]
          %v819 = vld [vmem:[%s396 + $0x50] sm:$0xff]
          %v820 = vld [vmem:[%s396 + $0x58] sm:$0xff]
          %v821 = vld [vmem:[%s396 + $0x60] sm:$0xff]
          %v822 = vld [vmem:[%s396 + $0x68] sm:$0xff]
          %v823 = vld [vmem:[%s396 + $0x70] sm:$0xff]
          %v824 = vld [vmem:[%s396 + $0x78] sm:$0xff]
          %v825 = vld [vmem:[%s453] sm:$0x1]
          %v827 = vlaneseq
          %v828 = vshrl.u32 %v827, 7
          %v829 = vsub.s32 0, %v828
          %v830 = vrot.slane %v825, %v829
          %832 = vmatprep.subr.mxu0 0.0
          %833 = vmatpush1.msra.mxu0 %v809
          %834 = vmatprep.subr.mxu0 0.0
          %835 = vmatpush1.msra.mxu0 %v810
          %836 = vmatprep.subr.mxu0 0.0
          %837 = vmatpush1.msra.mxu0 %v811
          %838 = vmatprep.subr.mxu0 0.0
          %839 = vmatpush1.msra.mxu0 %v812
          %840 = vmatprep.subr.mxu0 0.0
          %841 = vmatpush1.msra.mxu0 %v813
          %842 = vmatprep.subr.mxu0 0.0
          %843 = vmatpush1.msra.mxu0 %v814
          %844 = vmatprep.subr.mxu0 0.0
          %845 = vmatpush1.msra.mxu0 %v815
          %846 = vmatprep.subr.mxu0 0.0
          %847 = vmatpush1.msra.mxu0 %v816
          %848 = vmatprep.subr.mxu0 0.0
          %849 = vmatpush1.msra.mxu0 %v817
          %850 = vmatprep.subr.mxu0 0.0
          %851 = vmatpush1.msra.mxu0 %v818
          %852 = vmatprep.subr.mxu0 0.0
          %853 = vmatpush1.msra.mxu0 %v819
          %854 = vmatprep.subr.mxu0 0.0
          %855 = vmatpush1.msra.mxu0 %v820
          %856 = vmatprep.subr.mxu0 0.0
          %857 = vmatpush1.msra.mxu0 %v821
          %858 = vmatprep.subr.mxu0 0.0
          %859 = vmatpush1.msra.mxu0 %v822
          %860 = vmatprep.subr.mxu0 0.0
          %861 = vmatpush1.msra.mxu0 %v823
          %862 = vmatprep.subr.mxu0 0.0
          %863 = vmatpush1.msra.mxu0 %v824
          %864 = vmatprep.subr.mxu0 0.0
          %865 = vmatpush1.msra.mxu0 0.0
          %866 = vmatprep.subr.mxu0 0.0
          %867 = vmatpush1.msra.mxu0 0.0
          %868 = vmatprep.subr.mxu0 0.0
          %869 = vmatpush1.msra.mxu0 0.0
          %870 = vmatprep.subr.mxu0 0.0
          %871 = vmatpush1.msra.mxu0 0.0
          %872 = vmatprep.subr.mxu0 0.0
          %873 = vmatpush1.msra.mxu0 0.0
          %874 = vmatprep.subr.mxu0 0.0
          %875 = vmatpush1.msra.mxu0 0.0
          %876 = vmatprep.subr.mxu0 0.0
          %877 = vmatpush1.msra.mxu0 0.0
          %878 = vmatprep.subr.mxu0 0.0
          %879 = vmatpush1.msra.mxu0 0.0
          %880 = vmatprep.subr.mxu0 0.0
          %881 = vmatpush1.msra.mxu0 0.0
          %882 = vmatprep.subr.mxu0 0.0
          %883 = vmatpush1.msra.mxu0 0.0
          %884 = vmatprep.subr.mxu0 0.0
          %885 = vmatpush1.msra.mxu0 0.0
          %886 = vmatprep.subr.mxu0 0.0
          %887 = vmatpush1.msra.mxu0 0.0
          %888 = vmatprep.subr.mxu0 0.0
          %889 = vmatpush1.msra.mxu0 0.0
          %890 = vmatprep.subr.mxu0 0.0
          %891 = vmatpush1.msra.mxu0 0.0
          %892 = vmatprep.subr.mxu0 0.0
          %893 = vmatpush1.msra.mxu0 0.0
          %894 = vmatprep.subr.mxu0 0.0
          %895 = vmatpush1.msra.mxu0 0.0
          %896 = vmatprep.mubr.f32.mxu0 0.0
          %897 = vmatmul.mubr.f32.gmra.mrb[0].mxu0 %v793
          %v898 = vpop.f32.mrb[0].mxu0
          %v899 = vadd.f32 %v830, %v898
          %v900 = vpop.f32.mrb[0].mxu0
          %901 = vmatprep.mubr.f32.mxu0 0.0
          %902 = vmatmul.mubr.f32.gmra.mrb[0].mxu0 %v794
          %v903 = vpop.f32.mrb[0].mxu0
          %v904 = vadd.f32 %v830, %v903
          %v905 = vpop.f32.mrb[0].mxu0
          %906 = vmatprep.mubr.f32.mxu0 0.0
          %907 = vmatmul.mubr.f32.gmra.mrb[0].mxu0 %v795
          %v908 = vpop.f32.mrb[0].mxu0
          %v909 = vadd.f32 %v830, %v908
          %v910 = vpop.f32.mrb[0].mxu0
          %911 = vmatprep.mubr.f32.mxu0 0.0
          %912 = vmatmul.mubr.f32.gmra.mrb[0].mxu0 %v796
          %v913 = vpop.f32.mrb[0].mxu0
          %v914 = vadd.f32 %v830, %v913
          %v915 = vpop.f32.mrb[0].mxu0
          %916 = vmatprep.mubr.f32.mxu0 0.0
          %917 = vmatmul.mubr.f32.gmra.mrb[0].mxu0 %v797
          %v918 = vpop.f32.mrb[0].mxu0
          %v919 = vadd.f32 %v830, %v918
          %v920 = vpop.f32.mrb[0].mxu0
          %921 = vmatprep.mubr.f32.mxu0 0.0
          %922 = vmatmul.mubr.f32.gmra.mrb[0].mxu0 %v798
          %v923 = vpop.f32.mrb[0].mxu0
          %v924 = vadd.f32 %v830, %v923
          %v925 = vpop.f32.mrb[0].mxu0
          %926 = vmatprep.mubr.f32.mxu0 0.0
          %927 = vmatmul.mubr.f32.gmra.mrb[0].mxu0 %v799
          %v928 = vpop.f32.mrb[0].mxu0
          %v929 = vadd.f32 %v830, %v928
          %v930 = vpop.f32.mrb[0].mxu0
          %931 = vmatprep.mubr.f32.mxu0 0.0
          %932 = vmatmul.mubr.f32.gmra.mrb[0].mxu0 %v800
          %v933 = vpop.f32.mrb[0].mxu0
          %v934 = vadd.f32 %v830, %v933
          %v935 = vpop.f32.mrb[0].mxu0
          %936 = vmatprep.mubr.f32.mxu0 0.0
          %937 = vmatmul.mubr.f32.gmra.mrb[0].mxu0 %v801
          %v938 = vpop.f32.mrb[0].mxu0
          %v939 = vadd.f32 %v830, %v938
          %v940 = vpop.f32.mrb[0].mxu0
          %941 = vmatprep.mubr.f32.mxu0 0.0
          %942 = vmatmul.mubr.f32.gmra.mrb[0].mxu0 %v802
          %v943 = vpop.f32.mrb[0].mxu0
          %v944 = vadd.f32 %v830, %v943
          %v945 = vpop.f32.mrb[0].mxu0
          %946 = vmatprep.mubr.f32.mxu0 0.0
          %947 = vmatmul.mubr.f32.gmra.mrb[0].mxu0 %v803
          %v948 = vpop.f32.mrb[0].mxu0
          %v949 = vadd.f32 %v830, %v948
          %v950 = vpop.f32.mrb[0].mxu0
          %951 = vmatprep.mubr.f32.mxu0 0.0
          %952 = vmatmul.mubr.f32.gmra.mrb[0].mxu0 %v804
          %v953 = vpop.f32.mrb[0].mxu0
          %v954 = vadd.f32 %v830, %v953
          %v955 = vpop.f32.mrb[0].mxu0
          %956 = vmatprep.mubr.f32.mxu0 0.0
          %957 = vmatmul.mubr.f32.gmra.mrb[0].mxu0 %v805
          %v958 = vpop.f32.mrb[0].mxu0
          %v959 = vadd.f32 %v830, %v958
          %v960 = vpop.f32.mrb[0].mxu0
          %961 = vmatprep.mubr.f32.mxu0 0.0
          %962 = vmatmul.mubr.f32.gmra.mrb[0].mxu0 %v806
          %v963 = vpop.f32.mrb[0].mxu0
          %v964 = vadd.f32 %v830, %v963
          %v965 = vpop.f32.mrb[0].mxu0
          %966 = vmatprep.mubr.f32.mxu0 0.0
          %967 = vmatmul.mubr.f32.gmra.mrb[0].mxu0 %v807
          %v968 = vpop.f32.mrb[0].mxu0
          %v969 = vadd.f32 %v830, %v968
          %v970 = vpop.f32.mrb[0].mxu0
          %971 = vmatprep.mubr.f32.mxu0 0.0
          %972 = vmatmul.mubr.f32.gmra.mrb[0].mxu0 %v808
          %v973 = vpop.f32.mrb[0].mxu0
          %v974 = vadd.f32 %v830, %v973
          %v975 = vpop.f32.mrb[0].mxu0
          %976 = vdwg.mxu0
          %v977 = vmax.f32 %v899, 0.0
          %v978 = vmax.f32 %v904, 0.0
          %v979 = vmax.f32 %v909, 0.0
          %v980 = vmax.f32 %v914, 0.0
          %v981 = vmax.f32 %v919, 0.0
          %v982 = vmax.f32 %v924, 0.0
          %v983 = vmax.f32 %v929, 0.0
          %v984 = vmax.f32 %v934, 0.0
          %v985 = vmax.f32 %v939, 0.0
          %v986 = vmax.f32 %v944, 0.0
          %v987 = vmax.f32 %v949, 0.0
          %v988 = vmax.f32 %v954, 0.0
          %v989 = vmax.f32 %v959, 0.0
          %v990 = vmax.f32 %v964, 0.0
          %v991 = vmax.f32 %v969, 0.0
          %v992 = vmax.f32 %v974, 0.0
          %v993 = vld [vmem:[%s405] sm:$0xff]
          %v994 = vld [vmem:[%s405 + $0x8] sm:$0xff]
          %v995 = vld [vmem:[%s405 + $0x10] sm:$0xff]
          %v996 = vld [vmem:[%s405 + $0x18] sm:$0xff]
          %v997 = vld [vmem:[%s405 + $0x20] sm:$0xff]
          %v998 = vld [vmem:[%s405 + $0x28] sm:$0xff]
          %v999 = vld [vmem:[%s405 + $0x30] sm:$0xff]
          %v1000 = vld [vmem:[%s405 + $0x38] sm:$0xff]
          %v1001 = vld [vmem:[%s405 + $0x40] sm:$0xff]
          %v1002 = vld [vmem:[%s405 + $0x48] sm:$0xff]
          %v1003 = vld [vmem:[%s405 + $0x50] sm:$0xff]
          %v1004 = vld [vmem:[%s405 + $0x58] sm:$0xff]
          %v1005 = vld [vmem:[%s405 + $0x60] sm:$0xff]
          %v1006 = vld [vmem:[%s405 + $0x68] sm:$0xff]
          %v1007 = vld [vmem:[%s405 + $0x70] sm:$0xff]
          %v1008 = vld [vmem:[%s405 + $0x78] sm:$0xff]
          %v1009 = vld [vmem:[%s456] sm:$0x1]
          %v1011 = vlaneseq
          %v1012 = vshrl.u32 %v1011, 7
          %v1013 = vsub.s32 0, %v1012
          %v1014 = vrot.slane %v1009, %v1013
          %1016 = vmatprep.subr.mxu0 0.0
          %1017 = vmatpush1.msra.mxu0 %v993
          %1018 = vmatprep.subr.mxu0 0.0
          %1019 = vmatpush1.msra.mxu0 %v994
          %1020 = vmatprep.subr.mxu0 0.0
          %1021 = vmatpush1.msra.mxu0 %v995
          %1022 = vmatprep.subr.mxu0 0.0
          %1023 = vmatpush1.msra.mxu0 %v996
          %1024 = vmatprep.subr.mxu0 0.0
          %1025 = vmatpush1.msra.mxu0 %v997
          %1026 = vmatprep.subr.mxu0 0.0
          %1027 = vmatpush1.msra.mxu0 %v998
          %1028 = vmatprep.subr.mxu0 0.0
          %1029 = vmatpush1.msra.mxu0 %v999
          %1030 = vmatprep.subr.mxu0 0.0
          %1031 = vmatpush1.msra.mxu0 %v1000
          %1032 = vmatprep.subr.mxu0 0.0
          %1033 = vmatpush1.msra.mxu0 %v1001
          %1034 = vmatprep.subr.mxu0 0.0
          %1035 = vmatpush1.msra.mxu0 %v1002
          %1036 = vmatprep.subr.mxu0 0.0
          %1037 = vmatpush1.msra.mxu0 %v1003
          %1038 = vmatprep.subr.mxu0 0.0
          %1039 = vmatpush1.msra.mxu0 %v1004
          %1040 = vmatprep.subr.mxu0 0.0
          %1041 = vmatpush1.msra.mxu0 %v1005
          %1042 = vmatprep.subr.mxu0 0.0
          %1043 = vmatpush1.msra.mxu0 %v1006
          %1044 = vmatprep.subr.mxu0 0.0
          %1045 = vmatpush1.msra.mxu0 %v1007
          %1046 = vmatprep.subr.mxu0 0.0
          %1047 = vmatpush1.msra.mxu0 %v1008
          %1048 = vmatprep.subr.mxu0 0.0
          %1049 = vmatpush1.msra.mxu0 0.0
          %1050 = vmatprep.subr.mxu0 0.0
          %1051 = vmatpush1.msra.mxu0 0.0
          %1052 = vmatprep.subr.mxu0 0.0
          %1053 = vmatpush1.msra.mxu0 0.0
          %1054 = vmatprep.subr.mxu0 0.0
          %1055 = vmatpush1.msra.mxu0 0.0
          %1056 = vmatprep.subr.mxu0 0.0
          %1057 = vmatpush1.msra.mxu0 0.0
          %1058 = vmatprep.subr.mxu0 0.0
          %1059 = vmatpush1.msra.mxu0 0.0
          %1060 = vmatprep.subr.mxu0 0.0
          %1061 = vmatpush1.msra.mxu0 0.0
          %1062 = vmatprep.subr.mxu0 0.0
          %1063 = vmatpush1.msra.mxu0 0.0
          %1064 = vmatprep.subr.mxu0 0.0
          %1065 = vmatpush1.msra.mxu0 0.0
          %1066 = vmatprep.subr.mxu0 0.0
          %1067 = vmatpush1.msra.mxu0 0.0
          %1068 = vmatprep.subr.mxu0 0.0
          %1069 = vmatpush1.msra.mxu0 0.0
          %1070 = vmatprep.subr.mxu0 0.0
          %1071 = vmatpush1.msra.mxu0 0.0
          %1072 = vmatprep.subr.mxu0 0.0
          %1073 = vmatpush1.msra.mxu0 0.0
          %1074 = vmatprep.subr.mxu0 0.0
          %1075 = vmatpush1.msra.mxu0 0.0
          %1076 = vmatprep.subr.mxu0 0.0
          %1077 = vmatpush1.msra.mxu0 0.0
          %1078 = vmatprep.subr.mxu0 0.0
          %1079 = vmatpush1.msra.mxu0 0.0
          %1080 = vmatprep.mubr.f32.mxu0 0.0
          %1081 = vmatmul.mubr.f32.gmra.mrb[0].mxu0 %v977
          %v1082 = vpop.f32.mrb[0].mxu0
          %v1083 = vadd.f32 %v1014, %v1082
          %v1084 = vpop.f32.mrb[0].mxu0
          %1085 = vmatprep.mubr.f32.mxu0 0.0
          %1086 = vmatmul.mubr.f32.gmra.mrb[0].mxu0 %v978
          %v1087 = vpop.f32.mrb[0].mxu0
          %v1088 = vadd.f32 %v1014, %v1087
          %v1089 = vpop.f32.mrb[0].mxu0
          %1090 = vmatprep.mubr.f32.mxu0 0.0
          %1091 = vmatmul.mubr.f32.gmra.mrb[0].mxu0 %v979
          %v1092 = vpop.f32.mrb[0].mxu0
          %v1093 = vadd.f32 %v1014, %v1092
          %v1094 = vpop.f32.mrb[0].mxu0
          %1095 = vmatprep.mubr.f32.mxu0 0.0
          %1096 = vmatmul.mubr.f32.gmra.mrb[0].mxu0 %v980
          %v1097 = vpop.f32.mrb[0].mxu0
          %v1098 = vadd.f32 %v1014, %v1097
          %v1099 = vpop.f32.mrb[0].mxu0
          %1100 = vmatprep.mubr.f32.mxu0 0.0
          %1101 = vmatmul.mubr.f32.gmra.mrb[0].mxu0 %v981
          %v1102 = vpop.f32.mrb[0].mxu0
          %v1103 = vadd.f32 %v1014, %v1102
          %v1104 = vpop.f32.mrb[0].mxu0
          %1105 = vmatprep.mubr.f32.mxu0 0.0
          %1106 = vmatmul.mubr.f32.gmra.mrb[0].mxu0 %v982
          %v1107 = vpop.f32.mrb[0].mxu0
          %v1108 = vadd.f32 %v1014, %v1107
          %v1109 = vpop.f32.mrb[0].mxu0
          %1110 = vmatprep.mubr.f32.mxu0 0.0
          %1111 = vmatmul.mubr.f32.gmra.mrb[0].mxu0 %v983
          %v1112 = vpop.f32.mrb[0].mxu0
          %v1113 = vadd.f32 %v1014, %v1112
          %v1114 = vpop.f32.mrb[0].mxu0
          %1115 = vmatprep.mubr.f32.mxu0 0.0
          %1116 = vmatmul.mubr.f32.gmra.mrb[0].mxu0 %v984
          %v1117 = vpop.f32.mrb[0].mxu0
          %v1118 = vadd.f32 %v1014, %v1117
          %v1119 = vpop.f32.mrb[0].mxu0
          %1120 = vmatprep.mubr.f32.mxu0 0.0
          %1121 = vmatmul.mubr.f32.gmra.mrb[0].mxu0 %v985
          %v1122 = vpop.f32.mrb[0].mxu0
          %v1123 = vadd.f32 %v1014, %v1122
          %v1124 = vpop.f32.mrb[0].mxu0
          %1125 = vmatprep.mubr.f32.mxu0 0.0
          %1126 = vmatmul.mubr.f32.gmra.mrb[0].mxu0 %v986
          %v1127 = vpop.f32.mrb[0].mxu0
          %v1128 = vadd.f32 %v1014, %v1127
          %v1129 = vpop.f32.mrb[0].mxu0
          %1130 = vmatprep.mubr.f32.mxu0 0.0
          %1131 = vmatmul.mubr.f32.gmra.mrb[0].mxu0 %v987
          %v1132 = vpop.f32.mrb[0].mxu0
          %v1133 = vadd.f32 %v1014, %v1132
          %v1134 = vpop.f32.mrb[0].mxu0
          %1135 = vmatprep.mubr.f32.mxu0 0.0
          %1136 = vmatmul.mubr.f32.gmra.mrb[0].mxu0 %v988
          %v1137 = vpop.f32.mrb[0].mxu0
          %v1138 = vadd.f32 %v1014, %v1137
          %v1139 = vpop.f32.mrb[0].mxu0
          %1140 = vmatprep.mubr.f32.mxu0 0.0
          %1141 = vmatmul.mubr.f32.gmra.mrb[0].mxu0 %v989
          %v1142 = vpop.f32.mrb[0].mxu0
          %v1143 = vadd.f32 %v1014, %v1142
          %v1144 = vpop.f32.mrb[0].mxu0
          %1145 = vmatprep.mubr.f32.mxu0 0.0
          %1146 = vmatmul.mubr.f32.gmra.mrb[0].mxu0 %v990
          %v1147 = vpop.f32.mrb[0].mxu0
          %v1148 = vadd.f32 %v1014, %v1147
          %v1149 = vpop.f32.mrb[0].mxu0
          %1150 = vmatprep.mubr.f32.mxu0 0.0
          %1151 = vmatmul.mubr.f32.gmra.mrb[0].mxu0 %v991
          %v1152 = vpop.f32.mrb[0].mxu0
          %v1153 = vadd.f32 %v1014, %v1152
          %v1154 = vpop.f32.mrb[0].mxu0
          %1155 = vmatprep.mubr.f32.mxu0 0.0
          %1156 = vmatmul.mubr.f32.gmra.mrb[0].mxu0 %v992
          %v1157 = vpop.f32.mrb[0].mxu0
          %v1158 = vadd.f32 %v1014, %v1157
          %v1159 = vpop.f32.mrb[0].mxu0
          %1160 = vdwg.mxu0
          %s1161 = scalar_lea.vmem [#allocation4], %s463
          %1162 = vst [vmem:[%s1161] sm:$0xff] %v1083
          %1163 = vst [vmem:[%s1161 + $0x8] sm:$0xff] %v1088
          %1164 = vst [vmem:[%s1161 + $0x10] sm:$0xff] %v1093
          %1165 = vst [vmem:[%s1161 + $0x18] sm:$0xff] %v1098
          %1166 = vst [vmem:[%s1161 + $0x20] sm:$0xff] %v1103
          %1167 = vst [vmem:[%s1161 + $0x28] sm:$0xff] %v1108
          %1168 = vst [vmem:[%s1161 + $0x30] sm:$0xff] %v1113
          %1169 = vst [vmem:[%s1161 + $0x38] sm:$0xff] %v1118
          %1170 = vst [vmem:[%s1161 + $0x40] sm:$0xff] %v1123
          %1171 = vst [vmem:[%s1161 + $0x48] sm:$0xff] %v1128
          %1172 = vst [vmem:[%s1161 + $0x50] sm:$0xff] %v1133
          %1173 = vst [vmem:[%s1161 + $0x58] sm:$0xff] %v1138
          %1174 = vst [vmem:[%s1161 + $0x60] sm:$0xff] %v1143
          %1175 = vst [vmem:[%s1161 + $0x68] sm:$0xff] %v1148
          %1176 = vst [vmem:[%s1161 + $0x70] sm:$0xff] %v1153
          %1177 = vst [vmem:[%s1161 + $0x78] sm:$0xff] %v1158
          %v1178 = vlaneseq
          %v1179 = vshrl.u32 %v1178, 7
          %v1180 = vadd.s32 %v1179, 8
          %v1181 = vadd.s32 %v1179, 16
          %v1182 = vadd.s32 %v1179, 24
          %v1183 = vadd.s32 %v1179, 32
          %v1184 = vadd.s32 %v1179, 40
          %v1185 = vadd.s32 %v1179, 48
          %v1186 = vadd.s32 %v1179, 56
          %v1187 = vadd.s32 %v1179, 64
          %v1188 = vadd.s32 %v1179, 72
          %v1189 = vadd.s32 %v1179, 80
          %v1190 = vadd.s32 %v1179, 88
          %v1191 = vadd.s32 %v1179, 96
          %v1192 = vadd.s32 %v1179, 104
          %v1193 = vadd.s32 %v1179, 112
          %v1194 = vadd.s32 %v1179, 120
          %v1195 = vstv %s463
          %v1196 = vadd.s32 %v1179, %v1195
          %v1197 = vadd.s32 %v1180, %v1195
          %v1198 = vadd.s32 %v1181, %v1195
          %v1199 = vadd.s32 %v1182, %v1195
          %v1200 = vadd.s32 %v1183, %v1195
          %v1201 = vadd.s32 %v1184, %v1195
          %v1202 = vadd.s32 %v1185, %v1195
          %v1203 = vadd.s32 %v1186, %v1195
          %v1204 = vadd.s32 %v1187, %v1195
          %v1205 = vadd.s32 %v1188, %v1195
          %v1206 = vadd.s32 %v1189, %v1195
          %v1207 = vadd.s32 %v1190, %v1195
          %v1208 = vadd.s32 %v1191, %v1195
          %v1209 = vadd.s32 %v1192, %v1195
          %v1210 = vadd.s32 %v1193, %v1195
          %v1211 = vadd.s32 %v1194, %v1195
          %vm1212 = vcmp.lt.s32.totalorder %v1196, 20
          %vm1213 = vcmp.lt.s32.totalorder %v1197, 20
          %vm1214 = vcmp.lt.s32.totalorder %v1198, 20
          %vm1215 = vcmp.lt.s32.totalorder %v1199, 20
          %vm1216 = vcmp.lt.s32.totalorder %v1200, 20
          %vm1217 = vcmp.lt.s32.totalorder %v1201, 20
          %vm1218 = vcmp.lt.s32.totalorder %v1202, 20
          %vm1219 = vcmp.lt.s32.totalorder %v1203, 20
          %vm1220 = vcmp.lt.s32.totalorder %v1204, 20
          %vm1221 = vcmp.lt.s32.totalorder %v1205, 20
          %vm1222 = vcmp.lt.s32.totalorder %v1206, 20
          %vm1223 = vcmp.lt.s32.totalorder %v1207, 20
          %vm1224 = vcmp.lt.s32.totalorder %v1208, 20
          %vm1225 = vcmp.lt.s32.totalorder %v1209, 20
          %vm1226 = vcmp.lt.s32.totalorder %v1210, 20
          %vm1227 = vcmp.lt.s32.totalorder %v1211, 20
          %v1228 = vsel %vm1212, 1, 0
          %v1229 = vsel %vm1213, 1, 0
          %v1230 = vsel %vm1214, 1, 0
          %v1231 = vsel %vm1215, 1, 0
          %v1232 = vsel %vm1216, 1, 0
          %v1233 = vsel %vm1217, 1, 0
          %v1234 = vsel %vm1218, 1, 0
          %v1235 = vsel %vm1219, 1, 0
          %v1236 = vsel %vm1220, 1, 0
          %v1237 = vsel %vm1221, 1, 0
          %v1238 = vsel %vm1222, 1, 0
          %v1239 = vsel %vm1223, 1, 0
          %v1240 = vsel %vm1224, 1, 0
          %v1241 = vsel %vm1225, 1, 0
          %v1242 = vsel %vm1226, 1, 0
          %v1243 = vsel %vm1227, 1, 0
          %v1244 = vcvt.s32.f32 %v1228
          %v1245 = vcvt.s32.f32 %v1229
          %v1246 = vcvt.s32.f32 %v1230
          %v1247 = vcvt.s32.f32 %v1231
          %v1248 = vcvt.s32.f32 %v1232
          %v1249 = vcvt.s32.f32 %v1233
          %v1250 = vcvt.s32.f32 %v1234
          %v1251 = vcvt.s32.f32 %v1235
          %v1252 = vcvt.s32.f32 %v1236
          %v1253 = vcvt.s32.f32 %v1237
          %v1254 = vcvt.s32.f32 %v1238
          %v1255 = vcvt.s32.f32 %v1239
          %v1256 = vcvt.s32.f32 %v1240
          %v1257 = vcvt.s32.f32 %v1241
          %v1258 = vcvt.s32.f32 %v1242
          %v1259 = vcvt.s32.f32 %v1243
          %v1260 = vmul.f32 %v1083, %v1244
          %v1261 = vmul.f32 %v1088, %v1245
          %v1262 = vmul.f32 %v1093, %v1246
          %v1263 = vmul.f32 %v1098, %v1247
          %v1264 = vmul.f32 %v1103, %v1248
          %v1265 = vmul.f32 %v1108, %v1249
          %v1266 = vmul.f32 %v1113, %v1250
          %v1267 = vmul.f32 %v1118, %v1251
          %v1268 = vmul.f32 %v1123, %v1252
          %v1269 = vmul.f32 %v1128, %v1253
          %v1270 = vmul.f32 %v1133, %v1254
          %v1271 = vmul.f32 %v1138, %v1255
          %v1272 = vmul.f32 %v1143, %v1256
          %v1273 = vmul.f32 %v1148, %v1257
          %v1274 = vmul.f32 %v1153, %v1258
          %v1275 = vmul.f32 %v1158, %v1259
          %v1276 = vld [vmem:[#allocation5] sm:$0x1]
          %v1277 = vadd.f32 %v1260, %v1261
          %v1278 = vadd.f32 %v1277, %v1262
          %v1279 = vadd.f32 %v1278, %v1263
          %v1280 = vadd.f32 %v1279, %v1264
          %v1281 = vadd.f32 %v1280, %v1265
          %v1282 = vadd.f32 %v1281, %v1266
          %v1283 = vadd.f32 %v1282, %v1267
          %v1284 = vadd.f32 %v1283, %v1268
          %v1285 = vadd.f32 %v1284, %v1269
          %v1286 = vadd.f32 %v1285, %v1270
          %v1287 = vadd.f32 %v1286, %v1271
          %v1288 = vadd.f32 %v1287, %v1272
          %v1289 = vadd.f32 %v1288, %v1273
          %v1290 = vadd.f32 %v1289, %v1274
          %v1291 = vadd.f32 %v1290, %v1275
          %v1292 = vrot.slane %v1291, 4
          %v1293 = vadd.f32 %v1291, %v1292
          %v1294 = vrot.slane %v1293, 2
          %v1295 = vadd.f32 %v1293, %v1294
          %v1296 = vrot.slane %v1295, 1
          %v1297 = vadd.f32 %v1295, %v1296
          %v1298 = vadd.f32 %v1276, %v1297
          %1299 = vst [vmem:[#allocation5] sm:$0x1] %v1298
          %v1300 = vld [vmem:[#allocation6] sm:$0x1]
          %v1301 = vmul.f32 %v1260, %v1260
          %v1302 = vmul.f32 %v1261, %v1261
          %v1303 = vmul.f32 %v1262, %v1262
          %v1304 = vmul.f32 %v1263, %v1263
          %v1305 = vmul.f32 %v1264, %v1264
          %v1306 = vmul.f32 %v1265, %v1265
          %v1307 = vmul.f32 %v1266, %v1266
          %v1308 = vmul.f32 %v1267, %v1267
          %v1309 = vmul.f32 %v1268, %v1268
          %v1310 = vmul.f32 %v1269, %v1269
          %v1311 = vmul.f32 %v1270, %v1270
          %v1312 = vmul.f32 %v1271, %v1271
          %v1313 = vmul.f32 %v1272, %v1272
          %v1314 = vmul.f32 %v1273, %v1273
          %v1315 = vmul.f32 %v1274, %v1274
          %v1316 = vmul.f32 %v1275, %v1275
          %v1317 = vadd.f32 %v1301, %v1302
          %v1318 = vadd.f32 %v1317, %v1303
          %v1319 = vadd.f32 %v1318, %v1304
          %v1320 = vadd.f32 %v1319, %v1305
          %v1321 = vadd.f32 %v1320, %v1306
          %v1322 = vadd.f32 %v1321, %v1307
          %v1323 = vadd.f32 %v1322, %v1308
          %v1324 = vadd.f32 %v1323, %v1309
          %v1325 = vadd.f32 %v1324, %v1310
          %v1326 = vadd.f32 %v1325, %v1311
          %v1327 = vadd.f32 %v1326, %v1312
          %v1328 = vadd.f32 %v1327, %v1313
          %v1329 = vadd.f32 %v1328, %v1314
          %v1330 = vadd.f32 %v1329, %v1315
          %v1331 = vadd.f32 %v1330, %v1316
          %v1332 = vrot.slane %v1331, 4
          %v1333 = vadd.f32 %v1331, %v1332
          %v1334 = vrot.slane %v1333, 2
          %v1335 = vadd.f32 %v1333, %v1334
          %v1336 = vrot.slane %v1335, 1
          %v1337 = vadd.f32 %v1335, %v1336
          %v1338 = vadd.f32 %v1300, %v1337
          %1339 = vst [vmem:[#allocation6] sm:$0x1] %v1338
        $region84: #{tpu_custom_call.1} parent=51 // pred_fallthru
          _
        %p1340 = scmp.lt.s32.totalorder %s27, 2
        %p1341 = pnand %p507, %p1340
        %p1342 = pneg %p1341
        // Predicated region
        $region85: #{tpu_custom_call.1} parent=51 // pred_check
          _
        $region86: #{tpu_custom_call.1} parent=51 // pred_check_branch
          %1344 = sbr.rel (%p1341) target = $region88
        $region87: #{tpu_custom_call.1} parent=51 // pred_region
          %v1345 = vld [vmem:[#allocation4] sm:$0xff]
          %v1346 = vld [vmem:[#allocation4 + $0x8] sm:$0xff]
          %v1347 = vld [vmem:[#allocation4 + $0x10] sm:$0xff]
          %v1348 = vld [vmem:[#allocation4 + $0x18] sm:$0xff]
          %v1349 = vld [vmem:[#allocation4 + $0x20] sm:$0xff]
          %v1350 = vld [vmem:[#allocation4 + $0x28] sm:$0xff]
          %v1351 = vld [vmem:[#allocation4 + $0x30] sm:$0xff]
          %v1352 = vld [vmem:[#allocation4 + $0x38] sm:$0xff]
          %v1353 = vld [vmem:[#allocation4 + $0x40] sm:$0xff]
          %v1354 = vld [vmem:[#allocation4 + $0x48] sm:$0xff]
          %v1355 = vld [vmem:[#allocation4 + $0x50] sm:$0xff]
          %v1356 = vld [vmem:[#allocation4 + $0x58] sm:$0xff]
          %v1357 = vld [vmem:[#allocation4 + $0x60] sm:$0xff]
          %v1358 = vld [vmem:[#allocation4 + $0x68] sm:$0xff]
          %v1359 = vld [vmem:[#allocation4 + $0x70] sm:$0xff]
          %v1360 = vld [vmem:[#allocation4 + $0x78] sm:$0xff]
          %v1361 = vld [vmem:[#allocation5] sm:$0x1]
          %v1362 = vmul.f32 %v1361, 0.05
          %v1363 = vld [vmem:[#allocation6] sm:$0x1]
          %v1364 = vmul.f32 %v1363, 0.05
          %v1365 = vmul.f32 %v1362, %v1362
          %v1366 = vsub.f32 %v1364, %v1365
          %v1367 = vld [vmem:[%s459] sm:$0x1]
          %v1368 = vadd.f32 %v1366, 1e-05
          %v1369 = vrsqrt.pop %v1368
          %v1370 = vmul.f32 %v1367, %v1369
          %v1371 = vld [vmem:[%s462] sm:$0x1]
          %v1372 = vmul.f32 %v1362, %v1370
          %v1373 = vsub.f32 %v1371, %v1372
          %v1375 = vlaneseq
          %v1376 = vshrl.u32 %v1375, 7
          %v1377 = vsub.s32 0, %v1376
          %v1378 = vrot.slane %v1370, %v1377
          %v1380 = vmul.f32 %v1345, %v1378
          %v1381 = vmul.f32 %v1346, %v1378
          %v1382 = vmul.f32 %v1347, %v1378
          %v1383 = vmul.f32 %v1348, %v1378
          %v1384 = vmul.f32 %v1349, %v1378
          %v1385 = vmul.f32 %v1350, %v1378
          %v1386 = vmul.f32 %v1351, %v1378
          %v1387 = vmul.f32 %v1352, %v1378
          %v1388 = vmul.f32 %v1353, %v1378
          %v1389 = vmul.f32 %v1354, %v1378
          %v1390 = vmul.f32 %v1355, %v1378
          %v1391 = vmul.f32 %v1356, %v1378
          %v1392 = vmul.f32 %v1357, %v1378
          %v1393 = vmul.f32 %v1358, %v1378
          %v1394 = vmul.f32 %v1359, %v1378
          %v1395 = vmul.f32 %v1360, %v1378
          %v1397 = vlaneseq
          %v1398 = vshrl.u32 %v1397, 7
          %v1399 = vsub.s32 0, %v1398
          %v1400 = vrot.slane %v1373, %v1399
          %v1402 = vadd.f32 %v1380, %v1400
          %v1403 = vadd.f32 %v1381, %v1400
          %v1404 = vadd.f32 %v1382, %v1400
          %v1405 = vadd.f32 %v1383, %v1400
          %v1406 = vadd.f32 %v1384, %v1400
          %v1407 = vadd.f32 %v1385, %v1400
          %v1408 = vadd.f32 %v1386, %v1400
          %v1409 = vadd.f32 %v1387, %v1400
          %v1410 = vadd.f32 %v1388, %v1400
          %v1411 = vadd.f32 %v1389, %v1400
          %v1412 = vadd.f32 %v1390, %v1400
          %v1413 = vadd.f32 %v1391, %v1400
          %v1414 = vadd.f32 %v1392, %v1400
          %v1415 = vadd.f32 %v1393, %v1400
          %v1416 = vadd.f32 %v1394, %v1400
          %v1417 = vadd.f32 %v1395, %v1400
          %v1418 = vmax.f32 %v1402, 0.0
          %v1419 = vmax.f32 %v1403, 0.0
          %v1420 = vmax.f32 %v1404, 0.0
          %v1421 = vmax.f32 %v1405, 0.0
          %v1422 = vmax.f32 %v1406, 0.0
          %v1423 = vmax.f32 %v1407, 0.0
          %v1424 = vmax.f32 %v1408, 0.0
          %v1425 = vmax.f32 %v1409, 0.0
          %v1426 = vmax.f32 %v1410, 0.0
          %v1427 = vmax.f32 %v1411, 0.0
          %v1428 = vmax.f32 %v1412, 0.0
          %v1429 = vmax.f32 %v1413, 0.0
          %v1430 = vmax.f32 %v1414, 0.0
          %v1431 = vmax.f32 %v1415, 0.0
          %v1432 = vmax.f32 %v1416, 0.0
          %v1433 = vmax.f32 %v1417, 0.0
          %1434 = vst [vmem:[#allocation3] sm:$0xff] %v1418
          %1435 = vst [vmem:[#allocation3 + $0x8] sm:$0xff] %v1419
          %1436 = vst [vmem:[#allocation3 + $0x10] sm:$0xff] %v1420
          %1437 = vst [vmem:[#allocation3 + $0x18] sm:$0xff] %v1421
          %1438 = vst [vmem:[#allocation3 + $0x20] sm:$0xff] %v1422
          %1439 = vst [vmem:[#allocation3 + $0x28] sm:$0xff] %v1423
          %1440 = vst [vmem:[#allocation3 + $0x30] sm:$0xff] %v1424
          %1441 = vst [vmem:[#allocation3 + $0x38] sm:$0xff] %v1425
          %1442 = vst [vmem:[#allocation3 + $0x40] sm:$0xff] %v1426
          %1443 = vst [vmem:[#allocation3 + $0x48] sm:$0xff] %v1427
          %1444 = vst [vmem:[#allocation3 + $0x50] sm:$0xff] %v1428
          %1445 = vst [vmem:[#allocation3 + $0x58] sm:$0xff] %v1429
          %1446 = vst [vmem:[#allocation3 + $0x60] sm:$0xff] %v1430
          %1447 = vst [vmem:[#allocation3 + $0x68] sm:$0xff] %v1431
          %1448 = vst [vmem:[#allocation3 + $0x70] sm:$0xff] %v1432
          %1449 = vst [vmem:[#allocation3 + $0x78] sm:$0xff] %v1433
        $region88: #{tpu_custom_call.1} parent=51 // pred_fallthru
          _
        %p1450 = scmp.eq.s32.totalorder %s27, 2
        %p1451 = pnand %p507, %p1450
        %p1452 = pneg %p1451
        // Predicated region
        $region89: #{tpu_custom_call.1} parent=51 // pred_check
          _
        $region90: #{tpu_custom_call.1} parent=51 // pred_check_branch
          %1454 = sbr.rel (%p1451) target = $region92
        $region91: #{tpu_custom_call.1} parent=51 // pred_region
          %v1455 = vld [vmem:[#allocation4] sm:$0xff]
          %v1456 = vld [vmem:[#allocation4 + $0x8] sm:$0xff]
          %v1457 = vld [vmem:[#allocation4 + $0x10] sm:$0xff]
          %v1458 = vld [vmem:[#allocation4 + $0x18] sm:$0xff]
          %v1459 = vld [vmem:[#allocation4 + $0x20] sm:$0xff]
          %v1460 = vld [vmem:[#allocation4 + $0x28] sm:$0xff]
          %v1461 = vld [vmem:[#allocation4 + $0x30] sm:$0xff]
          %v1462 = vld [vmem:[#allocation4 + $0x38] sm:$0xff]
          %v1463 = vld [vmem:[#allocation4 + $0x40] sm:$0xff]
          %v1464 = vld [vmem:[#allocation4 + $0x48] sm:$0xff]
          %v1465 = vld [vmem:[#allocation4 + $0x50] sm:$0xff]
          %v1466 = vld [vmem:[#allocation4 + $0x58] sm:$0xff]
          %v1467 = vld [vmem:[#allocation4 + $0x60] sm:$0xff]
          %v1468 = vld [vmem:[#allocation4 + $0x68] sm:$0xff]
          %v1469 = vld [vmem:[#allocation4 + $0x70] sm:$0xff]
          %v1470 = vld [vmem:[#allocation4 + $0x78] sm:$0xff]
          %v1471 = vld [vmem:[#allocation5] sm:$0x1]
          %v1472 = vmul.f32 %v1471, 0.05
          %v1473 = vld [vmem:[#allocation6] sm:$0x1]
          %v1474 = vmul.f32 %v1473, 0.05
          %v1475 = vmul.f32 %v1472, %v1472
          %v1476 = vsub.f32 %v1474, %v1475
          %v1477 = vld [vmem:[%s459] sm:$0x1]
          %v1478 = vadd.f32 %v1476, 1e-05
          %v1479 = vrsqrt.pop %v1478
          %v1480 = vmul.f32 %v1477, %v1479
          %v1481 = vld [vmem:[%s462] sm:$0x1]
          %v1482 = vmul.f32 %v1472, %v1480
          %v1483 = vsub.f32 %v1481, %v1482
          %v1485 = vlaneseq
          %v1486 = vshrl.u32 %v1485, 7
          %v1487 = vsub.s32 0, %v1486
          %v1488 = vrot.slane %v1480, %v1487
          %v1490 = vmul.f32 %v1455, %v1488
          %v1491 = vmul.f32 %v1456, %v1488
          %v1492 = vmul.f32 %v1457, %v1488
          %v1493 = vmul.f32 %v1458, %v1488
          %v1494 = vmul.f32 %v1459, %v1488
          %v1495 = vmul.f32 %v1460, %v1488
          %v1496 = vmul.f32 %v1461, %v1488
          %v1497 = vmul.f32 %v1462, %v1488
          %v1498 = vmul.f32 %v1463, %v1488
          %v1499 = vmul.f32 %v1464, %v1488
          %v1500 = vmul.f32 %v1465, %v1488
          %v1501 = vmul.f32 %v1466, %v1488
          %v1502 = vmul.f32 %v1467, %v1488
          %v1503 = vmul.f32 %v1468, %v1488
          %v1504 = vmul.f32 %v1469, %v1488
          %v1505 = vmul.f32 %v1470, %v1488
          %v1507 = vlaneseq
          %v1508 = vshrl.u32 %v1507, 7
          %v1509 = vsub.s32 0, %v1508
          %v1510 = vrot.slane %v1483, %v1509
          %v1512 = vadd.f32 %v1490, %v1510
          %v1513 = vadd.f32 %v1491, %v1510
          %v1514 = vadd.f32 %v1492, %v1510
          %v1515 = vadd.f32 %v1493, %v1510
          %v1516 = vadd.f32 %v1494, %v1510
          %v1517 = vadd.f32 %v1495, %v1510
          %v1518 = vadd.f32 %v1496, %v1510
          %v1519 = vadd.f32 %v1497, %v1510
          %v1520 = vadd.f32 %v1498, %v1510
          %v1521 = vadd.f32 %v1499, %v1510
          %v1522 = vadd.f32 %v1500, %v1510
          %v1523 = vadd.f32 %v1501, %v1510
          %v1524 = vadd.f32 %v1502, %v1510
          %v1525 = vadd.f32 %v1503, %v1510
          %v1526 = vadd.f32 %v1504, %v1510
          %v1527 = vadd.f32 %v1505, %v1510
          %1528 = vst [vmem:[#allocation3] sm:$0xff] %v1512
          %1529 = vst [vmem:[#allocation3 + $0x8] sm:$0xff] %v1513
          %1530 = vst [vmem:[#allocation3 + $0x10] sm:$0xff] %v1514
          %1531 = vst [vmem:[#allocation3 + $0x18] sm:$0xff] %v1515
          %1532 = vst [vmem:[#allocation3 + $0x20] sm:$0xff] %v1516
          %1533 = vst [vmem:[#allocation3 + $0x28] sm:$0xff] %v1517
          %1534 = vst [vmem:[#allocation3 + $0x30] sm:$0xff] %v1518
          %1535 = vst [vmem:[#allocation3 + $0x38] sm:$0xff] %v1519
          %1536 = vst [vmem:[#allocation3 + $0x40] sm:$0xff] %v1520
          %1537 = vst [vmem:[#allocation3 + $0x48] sm:$0xff] %v1521
          %1538 = vst [vmem:[#allocation3 + $0x50] sm:$0xff] %v1522
          %1539 = vst [vmem:[#allocation3 + $0x58] sm:$0xff] %v1523
          %1540 = vst [vmem:[#allocation3 + $0x60] sm:$0xff] %v1524
          %1541 = vst [vmem:[#allocation3 + $0x68] sm:$0xff] %v1525
          %1542 = vst [vmem:[#allocation3 + $0x70] sm:$0xff] %v1526
          %1543 = vst [vmem:[#allocation3 + $0x78] sm:$0xff] %v1527
          %1544 = vst [vmem:[#allocation14] sm:$0xff] %v1512
          %1545 = vst [vmem:[#allocation14 + $0x8] sm:$0xff] %v1513
          %1546 = vst [vmem:[#allocation14 + $0x10] sm:$0xff] %v1514
          %1547 = vst [vmem:[#allocation14 + $0x18] sm:$0xff] %v1515
          %1548 = vst [vmem:[#allocation14 + $0x20] sm:$0xff] %v1516
          %1549 = vst [vmem:[#allocation14 + $0x28] sm:$0xff] %v1517
          %1550 = vst [vmem:[#allocation14 + $0x30] sm:$0xff] %v1518
          %1551 = vst [vmem:[#allocation14 + $0x38] sm:$0xff] %v1519
          %1552 = vst [vmem:[#allocation14 + $0x40] sm:$0xff] %v1520
          %1553 = vst [vmem:[#allocation14 + $0x48] sm:$0xff] %v1521
          %1554 = vst [vmem:[#allocation14 + $0x50] sm:$0xff] %v1522
          %1555 = vst [vmem:[#allocation14 + $0x58] sm:$0xff] %v1523
          %1556 = vst [vmem:[#allocation14 + $0x60] sm:$0xff] %v1524
          %1557 = vst [vmem:[#allocation14 + $0x68] sm:$0xff] %v1525
          %1558 = vst [vmem:[#allocation14 + $0x70] sm:$0xff] %v1526
          %1559 = vst [vmem:[#allocation14 + $0x78] sm:$0xff] %v1527
        $region92: #{tpu_custom_call.1} parent=51 // pred_fallthru
          _
        // Predicated region
        $region93: #{tpu_custom_call.1} parent=51 // pred_check
          %p1560 = pneg %p259
        $region94: #{tpu_custom_call.1} parent=51 // pred_check_branch
          %1562 = sbr.rel (%p1560) target = $region96
        $region95: #{tpu_custom_call.1} parent=51 // pred_region
          %s1564 = ssub.s32 2048, 2048
          %1565 = vsyncadd [#allocation9], %s1564
          %s1566 = sshll.u32 [#allocation14], 4
          %s1567 = int_to_ptr.vmem [resolvable:$true] %s1566
          %1572 = dma.vmem_to_hbm [thread:$0]  %s1567, 2048, %s8, [#allocation9], 128, 128, 8
        $region96: #{tpu_custom_call.1} parent=51 // pred_fallthru
          _
        // Predicated region
        $region97: #{tpu_custom_call.1} parent=51 // pred_check
          %p1573 = pneg %p259
        $region98: #{tpu_custom_call.1} parent=51 // pred_check_branch
          %1575 = sbr.rel (%p1573) target = $region100
        $region99: #{tpu_custom_call.1} parent=51 // pred_region
          %1576 = dma.done [#allocation9], 2048
        $region100: #{tpu_custom_call.1} parent=51 // pred_fallthru
          _
      $region52: #{tpu_custom_call.1} parent=5 // pred_fallthru
        _
      %p1577 = scmp.le.s32.totalorder 2, %s17
      // Predicated region
      $region101: #{tpu_custom_call.1} parent=5 // pred_check
        %p1578 = pneg %p1577
      $region102: #{tpu_custom_call.1} parent=5 // pred_check_branch
        %1580 = sbr.rel (%p1578) target = $region104
      $region103: #{tpu_custom_call.1} parent=5 // pred_region
        %s1581 = ssub.s32 %s17, 2
      $region104: #{tpu_custom_call.1} parent=5 // pred_fallthru
        _
    $region6: #{tpu_custom_call.1} parent=1 // loop_footer
      %s21 = sadd.s32 1, %s17
    $region7: #{tpu_custom_call.1} parent=1 // loop_footer_branch
      %16 = sbr.rel target = $region3
    $region8: #{tpu_custom_call.1} parent=1 // loop_exit
      _
    %1582 = vsyncpa [#allocation8], 1
    %s1583 = scalar_lea.sflag [#allocation8], 1
    %1584 = vsyncpa %s1583, 1
    %1585 = vsyncpa [#allocation11], 1
    %1586 = vsyncpa [#allocation9], 1
    %s1587 = scalar_lea.sflag [#allocation9], 1
    %1588 = vsyncpa %s1587, 1

</llo_original>
